<compile_context>
chip_gen: v6e
topology: v6e:2x2x1
jax: 0.10.0
libtpu: 0.0.40
codegen_flags: <defaults>
</compile_context>

<pallas_src>
import math
import functools
from typing import NamedTuple, Optional

import jax
import jax.numpy as jnp
from jax.experimental import pallas as pl
from jax.experimental.pallas import tpu as pltpu


# ---------------------------------------------------------------------------
# helpers
# ---------------------------------------------------------------------------
_FAST_PATH_VMEM_BUDGET = 10 * 1024 * 1024   # whole-problem-resident threshold
_RESIDENT_S_BUDGET = 4 * 1024 * 1024        # keep support matrix VMEM-resident


def _round_up(v, m):
    return (v + m - 1) // m * m


def _pad2(a, rows, cols):
    r, c = a.shape
    return jnp.pad(a, ((0, rows - r), (0, cols - c)))


def _fast_path_bytes(n_pad, nfeat_pad, nhid_pad, nout_pad):
    ins = 2 * (n_pad * n_pad + n_pad * nfeat_pad
               + nfeat_pad * nhid_pad + nhid_pad * nout_pad)
    ins += 4 * (nhid_pad + nout_pad)
    out = 4 * n_pad * nout_pad
    # generous estimate for in-kernel temporaries (s1 / h / s2)
    tmp = 4 * n_pad * (2 * nhid_pad + nout_pad)
    return ins + out + tmp


def _pick_row_tile(n, max_tile):
    """Row/K tile (multiple of 128); keeps >=2 row tiles so both v7x TCs get work."""
    n128 = _round_up(n, 128)
    half = max(128, (n128 // 2) // 128 * 128)
    tm = max(128, min(max_tile, half))
    n_pad = _round_up(n, tm)
    return n_pad, tm


# ---------------------------------------------------------------------------
# fast path: whole SGCN in a single gridless, fully VMEM-resident kernel
# ---------------------------------------------------------------------------
def _sgcn_fused_kernel(x_ref, adj_ref, w1_ref, b1_ref, w2_ref, b2_ref, o_ref):
    f32, bf16 = jnp.float32, jnp.bfloat16
    adj = adj_ref[...]
    s1 = jnp.dot(x_ref[...], w1_ref[...], preferred_element_type=f32).astype(bf16)
    h = jnp.maximum(
        jnp.dot(adj, s1, preferred_element_type=f32) + b1_ref[...], 0.0
    ).astype(bf16)
    # TODO(synk): dropout is identity in eval mode; training mode would use
    # pltpu.prng_seed + pltpu.prng_random_bits here.
    s2 = jnp.dot(h, w2_ref[...], preferred_element_type=f32).astype(bf16)
    o_ref[...] = jnp.dot(adj, s2, preferred_element_type=f32) + b2_ref[...]


def _sgcn_fused_call(x_p, adj_p, w1_p, b1_p, w2_p, b2_p):
    n_pad, nfeat_pad = x_p.shape
    nhid_pad = w1_p.shape[1]
    nout_pad = w2_p.shape[1]
    flops = 2 * n_pad * (nfeat_pad * nhid_pad + n_pad * nhid_pad
                         + nhid_pad * nout_pad + n_pad * nout_pad)
    bytes_acc = (x_p.size + adj_p.size + w1_p.size + w2_p.size) * 2 \
                + (b1_p.size + b2_p.size + n_pad * nout_pad) * 4
    # No grid / no BlockSpecs: every operand is placed whole in VMEM.
    return pl.pallas_call(
        _sgcn_fused_kernel,
        out_shape=jax.ShapeDtypeStruct((n_pad, nout_pad), jnp.float32),
        cost_estimate=pl.CostEstimate(flops=flops, transcendentals=0,
                                      bytes_accessed=bytes_acc),
    )(x_p, adj_p, w1_p, b1_p, w2_p, b2_p)


# ---------------------------------------------------------------------------
# tiled path, kernel 1: feature transform   s = x @ W   (row- and K-tiled)
# ---------------------------------------------------------------------------
def _xw_kernel(x_ref, w_ref, o_ref, acc_ref):
    @pl.when(pl.program_id(1) == 0)
    def _():
        acc_ref[...] = jnp.zeros_like(acc_ref)

    acc_ref[...] += jnp.dot(x_ref[...], w_ref[...],
                            preferred_element_type=jnp.float32)

    @pl.when(pl.program_id(1) == pl.num_programs(1) - 1)
    def _():
        o_ref[...] = acc_ref[...].astype(o_ref.dtype)


def _feature_transform(x_p, w_p, *, tm, tk):
    n_pad, k_pad = x_p.shape
    f_pad = w_p.shape[1]
    grid = (n_pad // tm, k_pad // tk)
    flops = 2 * n_pad * k_pad * f_pad
    bytes_acc = x_p.size * 2 + w_p.size * 2 * grid[0] + n_pad * f_pad * 2
    return pl.pallas_call(
        _xw_kernel,
        out_shape=jax.ShapeDtypeStruct((n_pad, f_pad), jnp.bfloat16),
        grid=grid,
        in_specs=[
            pl.BlockSpec((tm, tk), lambda i, k: (i, k)),
            pl.BlockSpec((tk, f_pad), lambda i, k: (k, 0)),
        ],
        out_specs=pl.BlockSpec((tm, f_pad), lambda i, k: (i, 0)),
        scratch_shapes=[pltpu.VMEM((tm, f_pad), jnp.float32)],
        compiler_params=pltpu.CompilerParams(
            dimension_semantics=("parallel", "arbitrary")),
        cost_estimate=pl.CostEstimate(flops=flops, transcendentals=0,
                                      bytes_accessed=bytes_acc),
    )(x_p, w_p)


# ---------------------------------------------------------------------------
# tiled path, kernel 2: fused layer-1 aggregation + layer-2 feature transform
#   s2 = relu(adj @ s1 + b1) @ W2        (h never leaves VMEM)
# ---------------------------------------------------------------------------
def _agg1_fused_kernel(adj_ref, s_ref, b1_ref, w2_ref, o_ref, acc_ref,
                       *, tk, s_resident):
    k = pl.program_id(1)

    @pl.when(k == 0)
    def _():
        acc_ref[...] = jnp.zeros_like(acc_ref)

    if s_resident:
        s_blk = s_ref[pl.ds(pl.multiple_of(k * tk, tk), tk), :]
    else:
        s_blk = s_ref[...]
    acc_ref[...] += jnp.dot(adj_ref[...], s_blk,
                            preferred_element_type=jnp.float32)

    @pl.when(k == pl.num_programs(1) - 1)
    def _():
        h = jnp.maximum(acc_ref[...] + b1_ref[...], 0.0).astype(jnp.bfloat16)
        # TODO(synk): dropout identity in eval mode.
        o_ref[...] = jnp.dot(h, w2_ref[...],
                             preferred_element_type=jnp.float32
                             ).astype(o_ref.dtype)


def _aggregate_fused(adj_p, s1, b1_p, w2_p, *, tm, tk):
    n_pad = adj_p.shape[0]
    nhid_pad = s1.shape[1]
    nout_pad = w2_p.shape[1]
    s_resident = s1.size * 2 <= _RESIDENT_S_BUDGET
    if s_resident:
        s_spec = pl.BlockSpec((n_pad, nhid_pad), lambda i, k: (0, 0))
    else:
        s_spec = pl.BlockSpec((tk, nhid_pad), lambda i, k: (k, 0))
    kernel = functools.partial(_agg1_fused_kernel, tk=tk, s_resident=s_resident)
    flops = 2 * n_pad * n_pad * nhid_pad + 2 * n_pad * nhid_pad * nout_pad
    bytes_acc = adj_p.size * 2 + s1.size * 2 + w2_p.size * 2 \
                + n_pad * nout_pad * 2
    return pl.pallas_call(
        kernel,
        out_shape=jax.ShapeDtypeStruct((n_pad, nout_pad), jnp.bfloat16),
        grid=(n_pad // tm, n_pad // tk),
        in_specs=[
            pl.BlockSpec((tm, tk), lambda i, k: (i, k)),              # adj panel
            s_spec,                                                   # support
            pl.BlockSpec((1, nhid_pad), lambda i, k: (0, 0)),         # b1
            pl.BlockSpec((nhid_pad, nout_pad), lambda i, k: (0, 0)),  # W2 resident
        ],
        out_specs=pl.BlockSpec((tm, nout_pad), lambda i, k: (i, 0)),
        scratch_shapes=[pltpu.VMEM((tm, nhid_pad), jnp.float32)],
        compiler_params=pltpu.CompilerParams(
            dimension_semantics=("parallel", "arbitrary")),
        cost_estimate=pl.CostEstimate(flops=flops, transcendentals=0,
                                      bytes_accessed=bytes_acc),
    )(adj_p, s1, b1_p, w2_p)


# ---------------------------------------------------------------------------
# tiled path, kernel 3: final aggregation   out = adj @ s2 + b2   (f32)
#   accumulates directly into the resident output block (no acc scratch)
# ---------------------------------------------------------------------------
def _agg2_kernel(adj_ref, s_ref, b2_ref, o_ref, *, tk, s_resident):
    k = pl.program_id(1)

    @pl.when(k == 0)
    def _():
        o_ref[...] = jnp.broadcast_to(b2_ref[...], o_ref.shape)

    if s_resident:
        s_blk = s_ref[pl.ds(pl.multiple_of(k * tk, tk), tk), :]
    else:
        s_blk = s_ref[...]
    o_ref[...] += jnp.dot(adj_ref[...], s_blk,
                          preferred_element_type=jnp.float32)


def _aggregate_final(adj_p, s2, b2_p, *, tm, tk):
    n_pad = adj_p.shape[0]
    nout_pad = s2.shape[1]
    s_resident = s2.size * 2 <= _RESIDENT_S_BUDGET
    if s_resident:
        s_spec = pl.BlockSpec((n_pad, nout_pad), lambda i, k: (0, 0))
    else:
        s_spec = pl.BlockSpec((tk, nout_pad), lambda i, k: (k, 0))
    kernel = functools.partial(_agg2_kernel, tk=tk, s_resident=s_resident)
    flops = 2 * n_pad * n_pad * nout_pad
    bytes_acc = adj_p.size * 2 + s2.size * 2 + n_pad * nout_pad * 4
    return pl.pallas_call(
        kernel,
        out_shape=jax.ShapeDtypeStruct((n_pad, nout_pad), jnp.float32),
        grid=(n_pad // tm, n_pad // tk),
        in_specs=[
            pl.BlockSpec((tm, tk), lambda i, k: (i, k)),
            s_spec,
            pl.BlockSpec((1, nout_pad), lambda i, k: (0, 0)),
        ],
        out_specs=pl.BlockSpec((tm, nout_pad), lambda i, k: (i, 0)),
        compiler_params=pltpu.CompilerParams(
            dimension_semantics=("parallel", "arbitrary")),
        cost_estimate=pl.CostEstimate(flops=flops, transcendentals=0,
                                      bytes_accessed=bytes_acc),
    )(adj_p, s2, b2_p)


# ---------------------------------------------------------------------------
# jitted forwards (padding of x done inside; adj/weights already padded)
# ---------------------------------------------------------------------------
@functools.partial(jax.jit, static_argnames=("n", "nout"))
def _forward_fused(x, adj_p, w1_p, b1_p, w2_p, b2_p, *, n, nout):
    n_pad = adj_p.shape[0]
    nfeat_pad = w1_p.shape[0]
    x_p = _pad2(x, n_pad, nfeat_pad).astype(jnp.bfloat16)
    out = _sgcn_fused_call(x_p, adj_p, w1_p, b1_p, w2_p, b2_p)
    return out[:n, :nout]


@functools.partial(jax.jit, static_argnames=("tm", "tk", "n", "nout"))
def _forward_tiled(x, adj_p, w1_p, b1_p, w2_p, b2_p, *, tm, tk, n, nout):
    n_pad = adj_p.shape[0]
    nfeat_pad = w1_p.shape[0]
    x_p = _pad2(x, n_pad, nfeat_pad).astype(jnp.bfloat16)
    tk_feat = nfeat_pad if nfeat_pad <= 512 else 512   # prepare() guarantees divisibility
    s1 = _feature_transform(x_p, w1_p, tm=tm, tk=tk_feat)
    s2 = _aggregate_fused(adj_p, s1, b1_p, w2_p, tm=tm, tk=tk)
    out = _aggregate_final(adj_p, s2, b2_p, tm=tm, tk=tk)
    return out[:n, :nout]


# ---------------------------------------------------------------------------
# public API: prepare once (pad + cast hoisted), then apply per input
# ---------------------------------------------------------------------------
class SGCNState(NamedTuple):
    adj_p: jax.Array
    w1_p: jax.Array
    b1_p: jax.Array
    w2_p: jax.Array
    b2_p: jax.Array
    n: int
    nout: int
    fused: bool
    tm: Optional[int]
    tk: Optional[int]


def sgcn_prepare(adj, w1, b1, w2, b2, *, force_tiled=False, tile=512):
    """Pads + casts static tensors once; decides fast/tiled path from shapes."""
    n = adj.shape[0]
    nfeat, nhid = w1.shape
    nout = w2.shape[1]
    tile = _round_up(tile, 128)

    nhid_pad = _round_up(nhid, 128)
    nout_pad = _round_up(nout, 128)
    nfeat128 = _round_up(nfeat, 128)
    n_pad_fast = _round_up(n, 128)

    fused = (not force_tiled) and (
        _fast_path_bytes(n_pad_fast, nfeat128, nhid_pad, nout_pad)
        <= _FAST_PATH_VMEM_BUDGET)

    if fused:
        n_pad, tm, tk = n_pad_fast, None, None
        nfeat_pad = nfeat128
    else:
        n_pad, tm = _pick_row_tile(n, tile)
        tk = tm
        nfeat_pad = nfeat128 if nfeat128 <= 512 else _round_up(nfeat, 512)

    bf16, f32 = jnp.bfloat16, jnp.float32
    adj_p = _pad2(jnp.asarray(adj, f32), n_pad, n_pad).astype(bf16)
    w1_p = _pad2(jnp.asarray(w1, f32), nfeat_pad, nhid_pad).astype(bf16)
    w2_p = _pad2(jnp.asarray(w2, f32), nhid_pad, nout_pad).astype(bf16)
    b1_p = _pad2(jnp.asarray(b1, f32).reshape(1, -1), 1, nhid_pad)
    b2_p = _pad2(jnp.asarray(b2, f32).reshape(1, -1), 1, nout_pad)

    return SGCNState(adj_p=adj_p, w1_p=w1_p, b1_p=b1_p, w2_p=w2_p, b2_p=b2_p,
                     n=n, nout=nout, fused=fused, tm=tm, tk=tk)


def sgcn_apply(state: SGCNState, x):
    if state.fused:
        return _forward_fused(x, state.adj_p, state.w1_p, state.b1_p,
                              state.w2_p, state.b2_p,
                              n=state.n, nout=state.nout)
    return _forward_tiled(x, state.adj_p, state.w1_p, state.b1_p,
                          state.w2_p, state.b2_p,
                          tm=state.tm, tk=state.tk,
                          n=state.n, nout=state.nout)


def sgcn_forward(x, adj, w1, b1, w2, b2, **prepare_kwargs):
    """One-shot convenience wrapper (prepare + apply)."""
    return sgcn_apply(sgcn_prepare(adj, w1, b1, w2, b2, **prepare_kwargs), x)


# ---------------------------------------------------------------------------
# params / reference
# ---------------------------------------------------------------------------
def init_gc_params(key, in_features, out_features):
    """Matches GraphConvolution.reset_parameters: U(-stdv, stdv), stdv=1/sqrt(out)."""
    stdv = 1.0 / math.sqrt(out_features)
    kw, kb = jax.random.split(key)
    w = jax.random.uniform(kw, (in_features, out_features),
                           minval=-stdv, maxval=stdv, dtype=jnp.float32)
    b = jax.random.uniform(kb, (out_features,),
                           minval=-stdv, maxval=stdv, dtype=jnp.float32)
    return w, b


def sgcn_reference(x, adj, w1, b1, w2, b2):
    """Reference matching the kernel's mixed precision (bf16 operands, f32 acc)."""
    bf16, f32 = jnp.bfloat16, jnp.float32
    s1 = jnp.dot(x.astype(bf16), w1.astype(bf16),
                 preferred_element_type=f32).astype(bf16)
    h = jnp.maximum(jnp.dot(adj.astype(bf16), s1,
                            preferred_element_type=f32) + b1, 0.0).astype(bf16)
    s2 = jnp.dot(h, w2.astype(bf16), preferred_element_type=f32).astype(bf16)
    return jnp.dot(adj.astype(bf16), s2, preferred_element_type=f32) + b2


# ---------------------------------------------------------------------------
if __name__ == "__main__":
    # Small shapes consistent with the module: N nodes, nfeat -> nhid -> nout.
    N, NFEAT, NHID, NOUT = 320, 48, 64, 16

    key = jax.random.PRNGKey(0)
    kx, kadj, k1, k2 = jax.random.split(key, 4)

    x = jax.random.normal(kx, (N, NFEAT), dtype=jnp.float32)

    # symmetric row-normalized dense adjacency
    a = jax.random.uniform(kadj, (N, N), dtype=jnp.float32)
    a = (a + a.T) * 0.5 + jnp.eye(N, dtype=jnp.float32)
    adj = a / jnp.sum(a, axis=1, keepdims=True)

    w1, b1 = init_gc_params(k1, NFEAT, NHID)
    w2, b2 = init_gc_params(k2, NHID, NOUT)

    ref = sgcn_reference(x, adj, w1, b1, w2, b2)

    # --- fast path: single fused, fully VMEM-resident kernel ---
    state_fast = sgcn_prepare(adj, w1, b1, w2, b2)
    assert state_fast.fused, "small test graph should take the fused fast path"
    out_fast = jax.block_until_ready(sgcn_apply(state_fast, x))
    assert out_fast.shape == (N, NOUT)
    assert jnp.allclose(out_fast, ref, atol=2e-2, rtol=2e-2), "fused path mismatch"

    # --- tiled path (forced, small tiles) exercises the large-graph kernels:
    #     K-tiled feature transform, fused relu(adj@s1+b1)@W2 epilogue with
    #     resident support, direct-into-output final aggregation ---
    state_tiled = sgcn_prepare(adj, w1, b1, w2, b2, force_tiled=True, tile=128)
    out_tiled = jax.block_until_ready(sgcn_apply(state_tiled, x))
    assert out_tiled.shape == (N, NOUT)
    assert jnp.allclose(out_tiled, ref, atol=2e-2, rtol=2e-2), "tiled path mismatch"

    print("KERNEL_OK")
</pallas_src>

<mosaic_0001>
module attributes {stable_mosaic.version = 11 : i64} {
  func.func @_sgcn_fused_kernel(%arg0: memref<384x128xbf16, #tpu.memory_space<vmem>>, %arg1: memref<384x384xbf16, #tpu.memory_space<vmem>>, %arg2: memref<128x128xbf16, #tpu.memory_space<vmem>>, %arg3: memref<1x128xf32, #tpu.memory_space<vmem>>, %arg4: memref<128x128xbf16, #tpu.memory_space<vmem>>, %arg5: memref<1x128xf32, #tpu.memory_space<vmem>>, %arg6: memref<384x128xf32, #tpu.memory_space<vmem>>) attributes {dimension_semantics = [], scalar_prefetch = 0 : i64, scratch_operands = 0 : i64, tpu.core_type = #tpu.core_type<tc>} {
    %c0 = arith.constant 0 : index
    %c0_0 = arith.constant 0 : index
    %0 = vector.load %arg1[%c0, %c0_0] : memref<384x384xbf16, #tpu.memory_space<vmem>>, vector<384x384xbf16>
    %c0_1 = arith.constant 0 : index
    %c0_2 = arith.constant 0 : index
    %1 = vector.load %arg0[%c0_1, %c0_2] : memref<384x128xbf16, #tpu.memory_space<vmem>>, vector<384x128xbf16>
    %c0_3 = arith.constant 0 : index
    %c0_4 = arith.constant 0 : index
    %2 = vector.load %arg2[%c0_3, %c0_4] : memref<128x128xbf16, #tpu.memory_space<vmem>>, vector<128x128xbf16>
    %cst = arith.constant dense<0.000000e+00> : vector<384x128xf32>
    %3 = tpu.matmul %1, %2, %cst {dimension_numbers = #tpu.dot_dimension_numbers<[1], [0], [0], [1], [0, 0, 1, 1], [], []>} : vector<384x128xbf16>, vector<128x128xbf16>, vector<384x128xf32> -> vector<384x128xf32>
    %4 = arith.truncf %3 : vector<384x128xf32> to vector<384x128xbf16>
    %cst_5 = arith.constant dense<0.000000e+00> : vector<384x128xf32>
    %5 = tpu.matmul %0, %4, %cst_5 {dimension_numbers = #tpu.dot_dimension_numbers<[1], [0], [0], [1], [0, 0, 1, 1], [], []>} : vector<384x384xbf16>, vector<384x128xbf16>, vector<384x128xf32> -> vector<384x128xf32>
    %c0_6 = arith.constant 0 : index
    %c0_7 = arith.constant 0 : index
    %6 = vector.load %arg3[%c0_6, %c0_7] : memref<1x128xf32, #tpu.memory_space<vmem>>, vector<1x128xf32>
    %7 = vector.broadcast %6 : vector<1x128xf32> to vector<384x128xf32>
    %8 = arith.addf %5, %7 : vector<384x128xf32>
    %cst_8 = arith.constant 0.000000e+00 : f32
    %9 = vector.broadcast %cst_8 : f32 to vector<384x128xf32>
    %10 = arith.maximumf %8, %9 : vector<384x128xf32>
    %11 = arith.truncf %10 : vector<384x128xf32> to vector<384x128xbf16>
    %c0_9 = arith.constant 0 : index
    %c0_10 = arith.constant 0 : index
    %12 = vector.load %arg4[%c0_9, %c0_10] : memref<128x128xbf16, #tpu.memory_space<vmem>>, vector<128x128xbf16>
    %cst_11 = arith.constant dense<0.000000e+00> : vector<384x128xf32>
    %13 = tpu.matmul %11, %12, %cst_11 {dimension_numbers = #tpu.dot_dimension_numbers<[1], [0], [0], [1], [0, 0, 1, 1], [], []>} : vector<384x128xbf16>, vector<128x128xbf16>, vector<384x128xf32> -> vector<384x128xf32>
    %14 = arith.truncf %13 : vector<384x128xf32> to vector<384x128xbf16>
    %cst_12 = arith.constant dense<0.000000e+00> : vector<384x128xf32>
    %15 = tpu.matmul %0, %14, %cst_12 {dimension_numbers = #tpu.dot_dimension_numbers<[1], [0], [0], [1], [0, 0, 1, 1], [], []>} : vector<384x384xbf16>, vector<384x128xbf16>, vector<384x128xf32> -> vector<384x128xf32>
    %c0_13 = arith.constant 0 : index
    %c0_14 = arith.constant 0 : index
    %16 = vector.load %arg5[%c0_13, %c0_14] : memref<1x128xf32, #tpu.memory_space<vmem>>, vector<1x128xf32>
    %17 = vector.broadcast %16 : vector<1x128xf32> to vector<384x128xf32>
    %18 = arith.addf %15, %17 : vector<384x128xf32>
    %c0_15 = arith.constant 0 : index
    %c0_16 = arith.constant 0 : index
    %19 = vector.load %arg6[%c0_15, %c0_16] : memref<384x128xf32, #tpu.memory_space<vmem>>, vector<384x128xf32>
    tpu.vector_store %arg6[%c0_15, %c0_16], %18 {strides = array<i32>} : memref<384x128xf32, #tpu.memory_space<vmem>>, vector<384x128xf32>,
    return
  }
}

</mosaic_0001>

<llo_original>
// kernel: _forward_fused.1
$region0: #{_forward_fused.1}
  #allocation0 [shape = 'u32[]', space=smem, size = 0x4, offset = 0x4, fixed_abs, tag = 'smem constant byte address 0x4 - core index']
  #allocation1 [shape = 'u32[144,128]{1,0:T(1,128)}', space=vmem, size = 0x12000, scoped, tag = 'internal scratch']
  %s0 = inlined_call_operand.vmem [shape: bf16[384,128], index: 0, kind: input, shape index: {}]
  %s1 = inlined_call_operand.vmem [shape: bf16[384,384], index: 1, kind: input, shape index: {}]
  %s2 = inlined_call_operand.vmem [shape: bf16[128,128], index: 2, kind: input, shape index: {}]
  %s3 = inlined_call_operand.vmem [shape: f32[1,128], index: 3, kind: input, shape index: {}]
  %s4 = inlined_call_operand.vmem [shape: bf16[128,128], index: 4, kind: input, shape index: {}]
  %s5 = inlined_call_operand.vmem [shape: f32[1,128], index: 5, kind: input, shape index: {}]
  %s6 = inlined_call_operand.vmem [shape: f32[384,128], index: 6, kind: output, shape index: {}]
  %s7 = sld [smem:[#allocation0]]
  $region34: #{_forward_fused.1} parent=0
    _
  %s9 = ssub.s32 1, %s7
  %s10 = scalar_select 0, %s9, %s7
  // Predicated region
  $region2: #{_forward_fused.1} parent=0 // pred_check
    _
  $region3: #{_forward_fused.1} parent=0 // pred_check_branch
    %12 = sbr.rel (0) target = $region5
  $region4: #{_forward_fused.1} parent=0 // pred_region
    _
  $region5: #{_forward_fused.1} parent=0 // pred_fallthru
    _
  // Predicated region
  $region6: #{_forward_fused.1} parent=0 // pred_check
    _
  $region7: #{_forward_fused.1} parent=0 // pred_check_branch
    %14 = sbr.rel (0) target = $region9
  $region8: #{_forward_fused.1} parent=0 // pred_region
    _
  $region9: #{_forward_fused.1} parent=0 // pred_fallthru
    _
  // Predicated region
  $region10: #{_forward_fused.1} parent=0 // pred_check
    _
  $region11: #{_forward_fused.1} parent=0 // pred_check_branch
    %16 = sbr.rel (0) target = $region13
  $region12: #{_forward_fused.1} parent=0 // pred_region
    _
  $region13: #{_forward_fused.1} parent=0 // pred_fallthru
    _
  // Predicated region
  $region14: #{_forward_fused.1} parent=0 // pred_check
    _
  $region15: #{_forward_fused.1} parent=0 // pred_check_branch
    %18 = sbr.rel (0) target = $region17
  $region16: #{_forward_fused.1} parent=0 // pred_region
    _
  $region17: #{_forward_fused.1} parent=0 // pred_fallthru
    _
  // Predicated region
  $region18: #{_forward_fused.1} parent=0 // pred_check
    _
  $region19: #{_forward_fused.1} parent=0 // pred_check_branch
    %20 = sbr.rel (0) target = $region21
  $region20: #{_forward_fused.1} parent=0 // pred_region
    _
  $region21: #{_forward_fused.1} parent=0 // pred_fallthru
    _
  // Predicated region
  $region22: #{_forward_fused.1} parent=0 // pred_check
    _
  $region23: #{_forward_fused.1} parent=0 // pred_check_branch
    %22 = sbr.rel (0) target = $region25
  $region24: #{_forward_fused.1} parent=0 // pred_region
    _
  $region25: #{_forward_fused.1} parent=0 // pred_fallthru
    _
  %v24 = vld [vmem:[%s1] sm:$0xff]
  %v25 = vld [vmem:[%s1 + $0x8] sm:$0xf]
  %v26 = vld [vmem:[%s1 + $0xc] sm:$0xff]
  %v27 = vld [vmem:[%s1 + $0x14] sm:$0xf]
  %v28 = vld [vmem:[%s1 + $0x18] sm:$0xff]
  %v29 = vld [vmem:[%s1 + $0x20] sm:$0xf]
  %v30 = vld [vmem:[%s1 + $0x24] sm:$0xff]
  %v31 = vld [vmem:[%s1 + $0x2c] sm:$0xf]
  %v32 = vld [vmem:[%s1 + $0x30] sm:$0xff]
  %v33 = vld [vmem:[%s1 + $0x38] sm:$0xf]
  %v34 = vld [vmem:[%s1 + $0x3c] sm:$0xff]
  %v35 = vld [vmem:[%s1 + $0x44] sm:$0xf]
  %v36 = vld [vmem:[%s1 + $0x48] sm:$0xff]
  %v37 = vld [vmem:[%s1 + $0x50] sm:$0xf]
  %v38 = vld [vmem:[%s1 + $0x54] sm:$0xff]
  %v39 = vld [vmem:[%s1 + $0x5c] sm:$0xf]
  %v40 = vld [vmem:[%s1 + $0x60] sm:$0xff]
  %v41 = vld [vmem:[%s1 + $0x68] sm:$0xf]
  %v42 = vld [vmem:[%s1 + $0x6c] sm:$0xff]
  %v43 = vld [vmem:[%s1 + $0x74] sm:$0xf]
  %v44 = vld [vmem:[%s1 + $0x78] sm:$0xff]
  %v45 = vld [vmem:[%s1 + $0x80] sm:$0xf]
  %v46 = vld [vmem:[%s1 + $0x84] sm:$0xff]
  %v47 = vld [vmem:[%s1 + $0x8c] sm:$0xf]
  %v48 = vld [vmem:[%s1 + $0x90] sm:$0xff]
  %v49 = vld [vmem:[%s1 + $0x98] sm:$0xf]
  %v50 = vld [vmem:[%s1 + $0x9c] sm:$0xff]
  %v51 = vld [vmem:[%s1 + $0xa4] sm:$0xf]
  %v52 = vld [vmem:[%s1 + $0xa8] sm:$0xff]
  %v53 = vld [vmem:[%s1 + $0xb0] sm:$0xf]
  %v54 = vld [vmem:[%s1 + $0xb4] sm:$0xff]
  %v55 = vld [vmem:[%s1 + $0xbc] sm:$0xf]
  %v56 = vld [vmem:[%s1 + $0xc0] sm:$0xff]
  %v57 = vld [vmem:[%s1 + $0xc8] sm:$0xf]
  %v58 = vld [vmem:[%s1 + $0xcc] sm:$0xff]
  %v59 = vld [vmem:[%s1 + $0xd4] sm:$0xf]
  %v60 = vld [vmem:[%s1 + $0xd8] sm:$0xff]
  %v61 = vld [vmem:[%s1 + $0xe0] sm:$0xf]
  %v62 = vld [vmem:[%s1 + $0xe4] sm:$0xff]
  %v63 = vld [vmem:[%s1 + $0xec] sm:$0xf]
  %v64 = vld [vmem:[%s1 + $0xf0] sm:$0xff]
  %v65 = vld [vmem:[%s1 + $0xf8] sm:$0xf]
  %v66 = vld [vmem:[%s1 + $0xfc] sm:$0xff]
  %v67 = vld [vmem:[%s1 + $0x104] sm:$0xf]
  %v68 = vld [vmem:[%s1 + $0x108] sm:$0xff]
  %v69 = vld [vmem:[%s1 + $0x110] sm:$0xf]
  %v70 = vld [vmem:[%s1 + $0x114] sm:$0xff]
  %v71 = vld [vmem:[%s1 + $0x11c] sm:$0xf]
  %v72 = vld [vmem:[%s1 + $0x120] sm:$0xff]
  %v73 = vld [vmem:[%s1 + $0x128] sm:$0xf]
  %v74 = vld [vmem:[%s1 + $0x12c] sm:$0xff]
  %v75 = vld [vmem:[%s1 + $0x134] sm:$0xf]
  %v76 = vld [vmem:[%s1 + $0x138] sm:$0xff]
  %v77 = vld [vmem:[%s1 + $0x140] sm:$0xf]
  %v78 = vld [vmem:[%s1 + $0x144] sm:$0xff]
  %v79 = vld [vmem:[%s1 + $0x14c] sm:$0xf]
  %v80 = vld [vmem:[%s1 + $0x150] sm:$0xff]
  %v81 = vld [vmem:[%s1 + $0x158] sm:$0xf]
  %v82 = vld [vmem:[%s1 + $0x15c] sm:$0xff]
  %v83 = vld [vmem:[%s1 + $0x164] sm:$0xf]
  %v84 = vld [vmem:[%s1 + $0x168] sm:$0xff]
  %v85 = vld [vmem:[%s1 + $0x170] sm:$0xf]
  %v86 = vld [vmem:[%s1 + $0x174] sm:$0xff]
  %v87 = vld [vmem:[%s1 + $0x17c] sm:$0xf]
  %v88 = vld [vmem:[%s1 + $0x180] sm:$0xff]
  %v89 = vld [vmem:[%s1 + $0x188] sm:$0xf]
  %v90 = vld [vmem:[%s1 + $0x18c] sm:$0xff]
  %v91 = vld [vmem:[%s1 + $0x194] sm:$0xf]
  %v92 = vld [vmem:[%s1 + $0x198] sm:$0xff]
  %v93 = vld [vmem:[%s1 + $0x1a0] sm:$0xf]
  %v94 = vld [vmem:[%s1 + $0x1a4] sm:$0xff]
  %v95 = vld [vmem:[%s1 + $0x1ac] sm:$0xf]
  %v96 = vld [vmem:[%s1 + $0x1b0] sm:$0xff]
  %v97 = vld [vmem:[%s1 + $0x1b8] sm:$0xf]
  %v98 = vld [vmem:[%s1 + $0x1bc] sm:$0xff]
  %v99 = vld [vmem:[%s1 + $0x1c4] sm:$0xf]
  %v100 = vld [vmem:[%s1 + $0x1c8] sm:$0xff]
  %v101 = vld [vmem:[%s1 + $0x1d0] sm:$0xf]
  %v102 = vld [vmem:[%s1 + $0x1d4] sm:$0xff]
  %v103 = vld [vmem:[%s1 + $0x1dc] sm:$0xf]
  %v104 = vld [vmem:[%s1 + $0x1e0] sm:$0xff]
  %v105 = vld [vmem:[%s1 + $0x1e8] sm:$0xf]
  %v106 = vld [vmem:[%s1 + $0x1ec] sm:$0xff]
  %v107 = vld [vmem:[%s1 + $0x1f4] sm:$0xf]
  %v108 = vld [vmem:[%s1 + $0x1f8] sm:$0xff]
  %v109 = vld [vmem:[%s1 + $0x200] sm:$0xf]
  %v110 = vld [vmem:[%s1 + $0x204] sm:$0xff]
  %v111 = vld [vmem:[%s1 + $0x20c] sm:$0xf]
  %v112 = vld [vmem:[%s1 + $0x210] sm:$0xff]
  %v113 = vld [vmem:[%s1 + $0x218] sm:$0xf]
  %v114 = vld [vmem:[%s1 + $0x21c] sm:$0xff]
  %v115 = vld [vmem:[%s1 + $0x224] sm:$0xf]
  %v116 = vld [vmem:[%s1 + $0x228] sm:$0xff]
  %v117 = vld [vmem:[%s1 + $0x230] sm:$0xf]
  %v118 = vld [vmem:[%s1 + $0x234] sm:$0xff]
  %v119 = vld [vmem:[%s1 + $0x23c] sm:$0xf]
  %v120 = vld [vmem:[%s0] sm:$0xf]
  %v121 = vld [vmem:[%s0 + $0x4] sm:$0xf]
  %v122 = vld [vmem:[%s0 + $0x8] sm:$0xf]
  %v123 = vld [vmem:[%s0 + $0xc] sm:$0xf]
  %v124 = vld [vmem:[%s0 + $0x10] sm:$0xf]
  %v125 = vld [vmem:[%s0 + $0x14] sm:$0xf]
  %v126 = vld [vmem:[%s0 + $0x18] sm:$0xf]
  %v127 = vld [vmem:[%s0 + $0x1c] sm:$0xf]
  %v128 = vld [vmem:[%s0 + $0x20] sm:$0xf]
  %v129 = vld [vmem:[%s0 + $0x24] sm:$0xf]
  %v130 = vld [vmem:[%s0 + $0x28] sm:$0xf]
  %v131 = vld [vmem:[%s0 + $0x2c] sm:$0xf]
  %v132 = vld [vmem:[%s0 + $0x30] sm:$0xf]
  %v133 = vld [vmem:[%s0 + $0x34] sm:$0xf]
  %v134 = vld [vmem:[%s0 + $0x38] sm:$0xf]
  %v135 = vld [vmem:[%s0 + $0x3c] sm:$0xf]
  %v136 = vld [vmem:[%s0 + $0x40] sm:$0xf]
  %v137 = vld [vmem:[%s0 + $0x44] sm:$0xf]
  %v138 = vld [vmem:[%s0 + $0x48] sm:$0xf]
  %v139 = vld [vmem:[%s0 + $0x4c] sm:$0xf]
  %v140 = vld [vmem:[%s0 + $0x50] sm:$0xf]
  %v141 = vld [vmem:[%s0 + $0x54] sm:$0xf]
  %v142 = vld [vmem:[%s0 + $0x58] sm:$0xf]
  %v143 = vld [vmem:[%s0 + $0x5c] sm:$0xf]
  %v144 = vld [vmem:[%s0 + $0x60] sm:$0xf]
  %v145 = vld [vmem:[%s0 + $0x64] sm:$0xf]
  %v146 = vld [vmem:[%s0 + $0x68] sm:$0xf]
  %v147 = vld [vmem:[%s0 + $0x6c] sm:$0xf]
  %v148 = vld [vmem:[%s0 + $0x70] sm:$0xf]
  %v149 = vld [vmem:[%s0 + $0x74] sm:$0xf]
  %v150 = vld [vmem:[%s0 + $0x78] sm:$0xf]
  %v151 = vld [vmem:[%s0 + $0x7c] sm:$0xf]
  %v152 = vld [vmem:[%s0 + $0x80] sm:$0xf]
  %v153 = vld [vmem:[%s0 + $0x84] sm:$0xf]
  %v154 = vld [vmem:[%s0 + $0x88] sm:$0xf]
  %v155 = vld [vmem:[%s0 + $0x8c] sm:$0xf]
  %v156 = vld [vmem:[%s0 + $0x90] sm:$0xf]
  %v157 = vld [vmem:[%s0 + $0x94] sm:$0xf]
  %v158 = vld [vmem:[%s0 + $0x98] sm:$0xf]
  %v159 = vld [vmem:[%s0 + $0x9c] sm:$0xf]
  %v160 = vld [vmem:[%s0 + $0xa0] sm:$0xf]
  %v161 = vld [vmem:[%s0 + $0xa4] sm:$0xf]
  %v162 = vld [vmem:[%s0 + $0xa8] sm:$0xf]
  %v163 = vld [vmem:[%s0 + $0xac] sm:$0xf]
  %v164 = vld [vmem:[%s0 + $0xb0] sm:$0xf]
  %v165 = vld [vmem:[%s0 + $0xb4] sm:$0xf]
  %v166 = vld [vmem:[%s0 + $0xb8] sm:$0xf]
  %v167 = vld [vmem:[%s0 + $0xbc] sm:$0xf]
  %v168 = vld [vmem:[%s2] sm:$0xf]
  %v169 = vld [vmem:[%s2 + $0x4] sm:$0xf]
  %v170 = vld [vmem:[%s2 + $0x8] sm:$0xf]
  %v171 = vld [vmem:[%s2 + $0xc] sm:$0xf]
  %v172 = vld [vmem:[%s2 + $0x10] sm:$0xf]
  %v173 = vld [vmem:[%s2 + $0x14] sm:$0xf]
  %v174 = vld [vmem:[%s2 + $0x18] sm:$0xf]
  %v175 = vld [vmem:[%s2 + $0x1c] sm:$0xf]
  %v176 = vld [vmem:[%s2 + $0x20] sm:$0xf]
  %v177 = vld [vmem:[%s2 + $0x24] sm:$0xf]
  %v178 = vld [vmem:[%s2 + $0x28] sm:$0xf]
  %v179 = vld [vmem:[%s2 + $0x2c] sm:$0xf]
  %v180 = vld [vmem:[%s2 + $0x30] sm:$0xf]
  %v181 = vld [vmem:[%s2 + $0x34] sm:$0xf]
  %v182 = vld [vmem:[%s2 + $0x38] sm:$0xf]
  %v183 = vld [vmem:[%s2 + $0x3c] sm:$0xf]
  %v232 = vunpack.c.l.b16 %v120
  %v233 = vunpack.c.l.b16 %v121
  %v234 = vunpack.c.l.b16 %v122
  %v235 = vunpack.c.l.b16 %v123
  %v236 = vunpack.c.l.b16 %v124
  %v237 = vunpack.c.l.b16 %v125
  %v238 = vunpack.c.l.b16 %v126
  %v239 = vunpack.c.l.b16 %v127
  %v240 = vunpack.c.l.b16 %v128
  %v241 = vunpack.c.l.b16 %v129
  %v242 = vunpack.c.l.b16 %v130
  %v243 = vunpack.c.l.b16 %v131
  %v244 = vunpack.c.l.b16 %v132
  %v245 = vunpack.c.l.b16 %v133
  %v246 = vunpack.c.l.b16 %v134
  %v247 = vunpack.c.l.b16 %v135
  %v248 = vunpack.c.l.b16 %v136
  %v249 = vunpack.c.l.b16 %v137
  %v250 = vunpack.c.l.b16 %v138
  %v251 = vunpack.c.l.b16 %v139
  %v252 = vunpack.c.l.b16 %v140
  %v253 = vunpack.c.l.b16 %v141
  %v254 = vunpack.c.l.b16 %v142
  %v255 = vunpack.c.l.b16 %v143
  %v256 = vunpack.c.l.b16 %v144
  %v257 = vunpack.c.l.b16 %v145
  %v258 = vunpack.c.l.b16 %v146
  %v259 = vunpack.c.l.b16 %v147
  %v260 = vunpack.c.l.b16 %v148
  %v261 = vunpack.c.l.b16 %v149
  %v262 = vunpack.c.l.b16 %v150
  %v263 = vunpack.c.l.b16 %v151
  %v264 = vunpack.c.l.b16 %v152
  %v265 = vunpack.c.l.b16 %v153
  %v266 = vunpack.c.l.b16 %v154
  %v267 = vunpack.c.l.b16 %v155
  %v268 = vunpack.c.l.b16 %v156
  %v269 = vunpack.c.l.b16 %v157
  %v270 = vunpack.c.l.b16 %v158
  %v271 = vunpack.c.l.b16 %v159
  %v272 = vunpack.c.l.b16 %v160
  %v273 = vunpack.c.l.b16 %v161
  %v274 = vunpack.c.l.b16 %v162
  %v275 = vunpack.c.l.b16 %v163
  %v276 = vunpack.c.l.b16 %v164
  %v277 = vunpack.c.l.b16 %v165
  %v278 = vunpack.c.l.b16 %v166
  %v279 = vunpack.c.l.b16 %v167
  %v280 = vpack.c.b16 %v233, %v232
  %v281 = vpack.c.b16 %v235, %v234
  %v282 = vpack.c.b16 %v237, %v236
  %v283 = vpack.c.b16 %v239, %v238
  %v284 = vpack.c.b16 %v241, %v240
  %v285 = vpack.c.b16 %v243, %v242
  %v286 = vpack.c.b16 %v245, %v244
  %v287 = vpack.c.b16 %v247, %v246
  %v288 = vpack.c.b16 %v249, %v248
  %v289 = vpack.c.b16 %v251, %v250
  %v290 = vpack.c.b16 %v253, %v252
  %v291 = vpack.c.b16 %v255, %v254
  %v292 = vpack.c.b16 %v257, %v256
  %v293 = vpack.c.b16 %v259, %v258
  %v294 = vpack.c.b16 %v261, %v260
  %v295 = vpack.c.b16 %v263, %v262
  %v296 = vpack.c.b16 %v265, %v264
  %v297 = vpack.c.b16 %v267, %v266
  %v298 = vpack.c.b16 %v269, %v268
  %v299 = vpack.c.b16 %v271, %v270
  %v300 = vpack.c.b16 %v273, %v272
  %v301 = vpack.c.b16 %v275, %v274
  %v302 = vpack.c.b16 %v277, %v276
  %v303 = vpack.c.b16 %v279, %v278
  %v344 = vunpack.c.l.b16 %v168
  %v345 = vunpack.c.l.b16 %v169
  %v346 = vunpack.c.l.b16 %v170
  %v347 = vunpack.c.l.b16 %v171
  %v348 = vunpack.c.l.b16 %v172
  %v349 = vunpack.c.l.b16 %v173
  %v350 = vunpack.c.l.b16 %v174
  %v351 = vunpack.c.l.b16 %v175
  %v352 = vunpack.c.l.b16 %v176
  %v353 = vunpack.c.l.b16 %v177
  %v354 = vunpack.c.l.b16 %v178
  %v355 = vunpack.c.l.b16 %v179
  %v356 = vunpack.c.l.b16 %v180
  %v357 = vunpack.c.l.b16 %v181
  %v358 = vunpack.c.l.b16 %v182
  %v359 = vunpack.c.l.b16 %v183
  %v360 = vpack.c.b16 %v345, %v344
  %v361 = vpack.c.b16 %v347, %v346
  %v362 = vpack.c.b16 %v349, %v348
  %v363 = vpack.c.b16 %v351, %v350
  %v364 = vpack.c.b16 %v353, %v352
  %v365 = vpack.c.b16 %v355, %v354
  %v366 = vpack.c.b16 %v357, %v356
  %v367 = vpack.c.b16 %v359, %v358
  %376 = vmatprep.subr.bf16.mxu0 0
  %377 = vmatpush1.bf16.msra.mxu0 %v367
  %378 = vmatprep.subr.bf16.mxu0 0
  %379 = vmatpush1.bf16.msra.mxu0 %v366
  %380 = vmatprep.subr.bf16.mxu0 0
  %381 = vmatpush1.bf16.msra.mxu0 %v365
  %382 = vmatprep.subr.bf16.mxu0 0
  %383 = vmatpush1.bf16.msra.mxu0 %v364
  %384 = vmatprep.subr.bf16.mxu0 0
  %385 = vmatpush1.bf16.msra.mxu0 %v363
  %386 = vmatprep.subr.bf16.mxu0 0
  %387 = vmatpush1.bf16.msra.mxu0 %v362
  %388 = vmatprep.subr.bf16.mxu0 0
  %389 = vmatpush1.bf16.msra.mxu0 %v361
  %390 = vmatprep.subr.bf16.mxu0 0
  %391 = vmatpush1.bf16.msra.mxu0 %v360
  %392 = vmatprep.subr.bf16.mxu0 0
  %393 = vmatpush2.bf16.msra.mxu0 0
  %394 = vmatprep.subr.bf16.mxu0 0
  %395 = vmatpush2.bf16.msra.mxu0 0
  %396 = vmatprep.subr.bf16.mxu0 0
  %397 = vmatpush2.bf16.msra.mxu0 0
  %398 = vmatprep.subr.bf16.mxu0 0
  %399 = vmatpush2.bf16.msra.mxu0 0
  %400 = vmatprep.subr.bf16.mxu0 0
  %401 = vmatpush2.bf16.msra.mxu0 0
  %402 = vmatprep.subr.bf16.mxu0 0
  %403 = vmatpush2.bf16.msra.mxu0 0
  %404 = vmatprep.subr.bf16.mxu0 0
  %405 = vmatpush2.bf16.msra.mxu0 0
  %406 = vmatprep.subr.bf16.mxu0 0
  %407 = vmatpush2.bf16.msra.mxu0 0
  %408 = vmatprep.mubr.bf16.mxu0 0
  %409 = vmatmul.mubr.bf16.gmra.mxu0 %v280
  %v410 = vpop.f32.mrf.mxu0
  %v411 = vadd.f32 0.0, %v410
  %v412 = vpop.f32.mrf.mxu0
  %v413 = vpop.f32.mrf.mxu0
  %v414 = vadd.f32 0.0, %v413
  %v415 = vpop.f32.mrf.mxu0
  %416 = vmatprep.mubr.bf16.mxu0 0
  %417 = vmatmul.mubr.bf16.gmra.mxu0 %v281
  %v418 = vpop.f32.mrf.mxu0
  %v419 = vadd.f32 0.0, %v418
  %v420 = vpop.f32.mrf.mxu0
  %v421 = vpop.f32.mrf.mxu0
  %v422 = vadd.f32 0.0, %v421
  %v423 = vpop.f32.mrf.mxu0
  %424 = vmatprep.mubr.bf16.mxu0 0
  %425 = vmatmul.mubr.bf16.gmra.mxu0 %v282
  %v426 = vpop.f32.mrf.mxu0
  %v427 = vadd.f32 0.0, %v426
  %v428 = vpop.f32.mrf.mxu0
  %v429 = vpop.f32.mrf.mxu0
  %v430 = vadd.f32 0.0, %v429
  %v431 = vpop.f32.mrf.mxu0
  %432 = vmatprep.mubr.bf16.mxu0 0
  %433 = vmatmul.mubr.bf16.gmra.mxu0 %v283
  %v434 = vpop.f32.mrf.mxu0
  %v435 = vadd.f32 0.0, %v434
  %v436 = vpop.f32.mrf.mxu0
  %v437 = vpop.f32.mrf.mxu0
  %v438 = vadd.f32 0.0, %v437
  %v439 = vpop.f32.mrf.mxu0
  %440 = vmatprep.mubr.bf16.mxu0 0
  %441 = vmatmul.mubr.bf16.gmra.mxu0 %v284
  %v442 = vpop.f32.mrf.mxu0
  %v443 = vadd.f32 0.0, %v442
  %v444 = vpop.f32.mrf.mxu0
  %v445 = vpop.f32.mrf.mxu0
  %v446 = vadd.f32 0.0, %v445
  %v447 = vpop.f32.mrf.mxu0
  %448 = vmatprep.mubr.bf16.mxu0 0
  %449 = vmatmul.mubr.bf16.gmra.mxu0 %v285
  %v450 = vpop.f32.mrf.mxu0
  %v451 = vadd.f32 0.0, %v450
  %v452 = vpop.f32.mrf.mxu0
  %v453 = vpop.f32.mrf.mxu0
  %v454 = vadd.f32 0.0, %v453
  %v455 = vpop.f32.mrf.mxu0
  %456 = vmatprep.mubr.bf16.mxu0 0
  %457 = vmatmul.mubr.bf16.gmra.mxu0 %v286
  %v458 = vpop.f32.mrf.mxu0
  %v459 = vadd.f32 0.0, %v458
  %v460 = vpop.f32.mrf.mxu0
  %v461 = vpop.f32.mrf.mxu0
  %v462 = vadd.f32 0.0, %v461
  %v463 = vpop.f32.mrf.mxu0
  %464 = vmatprep.mubr.bf16.mxu0 0
  %465 = vmatmul.mubr.bf16.gmra.mxu0 %v287
  %v466 = vpop.f32.mrf.mxu0
  %v467 = vadd.f32 0.0, %v466
  %v468 = vpop.f32.mrf.mxu0
  %v469 = vpop.f32.mrf.mxu0
  %v470 = vadd.f32 0.0, %v469
  %v471 = vpop.f32.mrf.mxu0
  %472 = vmatprep.mubr.bf16.mxu0 0
  %473 = vmatmul.mubr.bf16.gmra.mxu0 %v288
  %v474 = vpop.f32.mrf.mxu0
  %v475 = vadd.f32 0.0, %v474
  %v476 = vpop.f32.mrf.mxu0
  %v477 = vpop.f32.mrf.mxu0
  %v478 = vadd.f32 0.0, %v477
  %v479 = vpop.f32.mrf.mxu0
  %480 = vmatprep.mubr.bf16.mxu0 0
  %481 = vmatmul.mubr.bf16.gmra.mxu0 %v289
  %v482 = vpop.f32.mrf.mxu0
  %v483 = vadd.f32 0.0, %v482
  %v484 = vpop.f32.mrf.mxu0
  %v485 = vpop.f32.mrf.mxu0
  %v486 = vadd.f32 0.0, %v485
  %v487 = vpop.f32.mrf.mxu0
  %488 = vmatprep.mubr.bf16.mxu0 0
  %489 = vmatmul.mubr.bf16.gmra.mxu0 %v290
  %v490 = vpop.f32.mrf.mxu0
  %v491 = vadd.f32 0.0, %v490
  %v492 = vpop.f32.mrf.mxu0
  %v493 = vpop.f32.mrf.mxu0
  %v494 = vadd.f32 0.0, %v493
  %v495 = vpop.f32.mrf.mxu0
  %496 = vmatprep.mubr.bf16.mxu0 0
  %497 = vmatmul.mubr.bf16.gmra.mxu0 %v291
  %v498 = vpop.f32.mrf.mxu0
  %v499 = vadd.f32 0.0, %v498
  %v500 = vpop.f32.mrf.mxu0
  %v501 = vpop.f32.mrf.mxu0
  %v502 = vadd.f32 0.0, %v501
  %v503 = vpop.f32.mrf.mxu0
  %504 = vmatprep.mubr.bf16.mxu0 0
  %505 = vmatmul.mubr.bf16.gmra.mxu0 %v292
  %v506 = vpop.f32.mrf.mxu0
  %v507 = vadd.f32 0.0, %v506
  %v508 = vpop.f32.mrf.mxu0
  %v509 = vpop.f32.mrf.mxu0
  %v510 = vadd.f32 0.0, %v509
  %v511 = vpop.f32.mrf.mxu0
  %512 = vmatprep.mubr.bf16.mxu0 0
  %513 = vmatmul.mubr.bf16.gmra.mxu0 %v293
  %v514 = vpop.f32.mrf.mxu0
  %v515 = vadd.f32 0.0, %v514
  %v516 = vpop.f32.mrf.mxu0
  %v517 = vpop.f32.mrf.mxu0
  %v518 = vadd.f32 0.0, %v517
  %v519 = vpop.f32.mrf.mxu0
  %520 = vmatprep.mubr.bf16.mxu0 0
  %521 = vmatmul.mubr.bf16.gmra.mxu0 %v294
  %v522 = vpop.f32.mrf.mxu0
  %v523 = vadd.f32 0.0, %v522
  %v524 = vpop.f32.mrf.mxu0
  %v525 = vpop.f32.mrf.mxu0
  %v526 = vadd.f32 0.0, %v525
  %v527 = vpop.f32.mrf.mxu0
  %528 = vmatprep.mubr.bf16.mxu0 0
  %529 = vmatmul.mubr.bf16.gmra.mxu0 %v295
  %v530 = vpop.f32.mrf.mxu0
  %v531 = vadd.f32 0.0, %v530
  %v532 = vpop.f32.mrf.mxu0
  %v533 = vpop.f32.mrf.mxu0
  %v534 = vadd.f32 0.0, %v533
  %v535 = vpop.f32.mrf.mxu0
  %536 = vmatprep.mubr.bf16.mxu0 0
  %537 = vmatmul.mubr.bf16.gmra.mxu0 %v296
  %v538 = vpop.f32.mrf.mxu0
  %v539 = vadd.f32 0.0, %v538
  %v540 = vpop.f32.mrf.mxu0
  %v541 = vpop.f32.mrf.mxu0
  %v542 = vadd.f32 0.0, %v541
  %v543 = vpop.f32.mrf.mxu0
  %544 = vmatprep.mubr.bf16.mxu0 0
  %545 = vmatmul.mubr.bf16.gmra.mxu0 %v297
  %v546 = vpop.f32.mrf.mxu0
  %v547 = vadd.f32 0.0, %v546
  %v548 = vpop.f32.mrf.mxu0
  %v549 = vpop.f32.mrf.mxu0
  %v550 = vadd.f32 0.0, %v549
  %v551 = vpop.f32.mrf.mxu0
  %552 = vmatprep.mubr.bf16.mxu0 0
  %553 = vmatmul.mubr.bf16.gmra.mxu0 %v298
  %v554 = vpop.f32.mrf.mxu0
  %v555 = vadd.f32 0.0, %v554
  %v556 = vpop.f32.mrf.mxu0
  %v557 = vpop.f32.mrf.mxu0
  %v558 = vadd.f32 0.0, %v557
  %v559 = vpop.f32.mrf.mxu0
  %560 = vmatprep.mubr.bf16.mxu0 0
  %561 = vmatmul.mubr.bf16.gmra.mxu0 %v299
  %v562 = vpop.f32.mrf.mxu0
  %v563 = vadd.f32 0.0, %v562
  %v564 = vpop.f32.mrf.mxu0
  %v565 = vpop.f32.mrf.mxu0
  %v566 = vadd.f32 0.0, %v565
  %v567 = vpop.f32.mrf.mxu0
  %568 = vmatprep.mubr.bf16.mxu0 0
  %569 = vmatmul.mubr.bf16.gmra.mxu0 %v300
  %v570 = vpop.f32.mrf.mxu0
  %v571 = vadd.f32 0.0, %v570
  %v572 = vpop.f32.mrf.mxu0
  %v573 = vpop.f32.mrf.mxu0
  %v574 = vadd.f32 0.0, %v573
  %v575 = vpop.f32.mrf.mxu0
  %576 = vmatprep.mubr.bf16.mxu0 0
  %577 = vmatmul.mubr.bf16.gmra.mxu0 %v301
  %v578 = vpop.f32.mrf.mxu0
  %v579 = vadd.f32 0.0, %v578
  %v580 = vpop.f32.mrf.mxu0
  %v581 = vpop.f32.mrf.mxu0
  %v582 = vadd.f32 0.0, %v581
  %v583 = vpop.f32.mrf.mxu0
  %584 = vmatprep.mubr.bf16.mxu0 0
  %585 = vmatmul.mubr.bf16.gmra.mxu0 %v302
  %v586 = vpop.f32.mrf.mxu0
  %v587 = vadd.f32 0.0, %v586
  %v588 = vpop.f32.mrf.mxu0
  %v589 = vpop.f32.mrf.mxu0
  %v590 = vadd.f32 0.0, %v589
  %v591 = vpop.f32.mrf.mxu0
  %592 = vmatprep.mubr.bf16.mxu0 0
  %593 = vmatmul.mubr.bf16.gmra.mxu0 %v303
  %v594 = vpop.f32.mrf.mxu0
  %v595 = vadd.f32 0.0, %v594
  %v596 = vpop.f32.mrf.mxu0
  %v597 = vpop.f32.mrf.mxu0
  %v598 = vadd.f32 0.0, %v597
  %v599 = vpop.f32.mrf.mxu0
  %600 = vdwg.mxu0
  %v601 = vpack.c.bf16 %v414, %v411
  %v602 = vpack.c.bf16 %v422, %v419
  %v603 = vpack.c.bf16 %v430, %v427
  %v604 = vpack.c.bf16 %v438, %v435
  %v605 = vpack.c.bf16 %v446, %v443
  %v606 = vpack.c.bf16 %v454, %v451
  %v607 = vpack.c.bf16 %v462, %v459
  %v608 = vpack.c.bf16 %v470, %v467
  %v609 = vpack.c.bf16 %v478, %v475
  %v610 = vpack.c.bf16 %v486, %v483
  %v611 = vpack.c.bf16 %v494, %v491
  %v612 = vpack.c.bf16 %v502, %v499
  %v613 = vpack.c.bf16 %v510, %v507
  %v614 = vpack.c.bf16 %v518, %v515
  %v615 = vpack.c.bf16 %v526, %v523
  %v616 = vpack.c.bf16 %v534, %v531
  %v617 = vpack.c.bf16 %v542, %v539
  %v618 = vpack.c.bf16 %v550, %v547
  %v619 = vpack.c.bf16 %v558, %v555
  %v620 = vpack.c.bf16 %v566, %v563
  %v621 = vpack.c.bf16 %v574, %v571
  %v622 = vpack.c.bf16 %v582, %v579
  %v623 = vpack.c.bf16 %v590, %v587
  %v624 = vpack.c.bf16 %v598, %v595
  %v625 = vld [vmem:[%s3] sm:$0x1]
  %v627 = vlaneseq
  %v628 = vshrl.u32 %v627, 7
  %v629 = vsub.s32 0, %v628
  %v630 = vrot.slane %v625, %v629
  %v728 = vunpack.c.l.b16 %v24
  %v729 = vunpack.c.h.b16 %v24
  %v730 = vunpack.c.l.b16 %v25
  %v731 = vunpack.c.l.b16 %v26
  %v732 = vunpack.c.h.b16 %v26
  %v733 = vunpack.c.l.b16 %v27
  %v734 = vunpack.c.l.b16 %v28
  %v735 = vunpack.c.h.b16 %v28
  %v736 = vunpack.c.l.b16 %v29
  %v737 = vunpack.c.l.b16 %v30
  %v738 = vunpack.c.h.b16 %v30
  %v739 = vunpack.c.l.b16 %v31
  %v740 = vunpack.c.l.b16 %v32
  %v741 = vunpack.c.h.b16 %v32
  %v742 = vunpack.c.l.b16 %v33
  %v743 = vunpack.c.l.b16 %v34
  %v744 = vunpack.c.h.b16 %v34
  %v745 = vunpack.c.l.b16 %v35
  %v746 = vunpack.c.l.b16 %v36
  %v747 = vunpack.c.h.b16 %v36
  %v748 = vunpack.c.l.b16 %v37
  %v749 = vunpack.c.l.b16 %v38
  %v750 = vunpack.c.h.b16 %v38
  %v751 = vunpack.c.l.b16 %v39
  %v752 = vunpack.c.l.b16 %v40
  %v753 = vunpack.c.h.b16 %v40
  %v754 = vunpack.c.l.b16 %v41
  %v755 = vunpack.c.l.b16 %v42
  %v756 = vunpack.c.h.b16 %v42
  %v757 = vunpack.c.l.b16 %v43
  %v758 = vunpack.c.l.b16 %v44
  %v759 = vunpack.c.h.b16 %v44
  %v760 = vunpack.c.l.b16 %v45
  %v761 = vunpack.c.l.b16 %v46
  %v762 = vunpack.c.h.b16 %v46
  %v763 = vunpack.c.l.b16 %v47
  %v764 = vunpack.c.l.b16 %v48
  %v765 = vunpack.c.h.b16 %v48
  %v766 = vunpack.c.l.b16 %v49
  %v767 = vunpack.c.l.b16 %v50
  %v768 = vunpack.c.h.b16 %v50
  %v769 = vunpack.c.l.b16 %v51
  %v770 = vunpack.c.l.b16 %v52
  %v771 = vunpack.c.h.b16 %v52
  %v772 = vunpack.c.l.b16 %v53
  %v773 = vunpack.c.l.b16 %v54
  %v774 = vunpack.c.h.b16 %v54
  %v775 = vunpack.c.l.b16 %v55
  %v776 = vunpack.c.l.b16 %v56
  %v777 = vunpack.c.h.b16 %v56
  %v778 = vunpack.c.l.b16 %v57
  %v779 = vunpack.c.l.b16 %v58
  %v780 = vunpack.c.h.b16 %v58
  %v781 = vunpack.c.l.b16 %v59
  %v782 = vunpack.c.l.b16 %v60
  %v783 = vunpack.c.h.b16 %v60
  %v784 = vunpack.c.l.b16 %v61
  %v785 = vunpack.c.l.b16 %v62
  %v786 = vunpack.c.h.b16 %v62
  %v787 = vunpack.c.l.b16 %v63
  %v788 = vunpack.c.l.b16 %v64
  %v789 = vunpack.c.h.b16 %v64
  %v790 = vunpack.c.l.b16 %v65
  %v791 = vunpack.c.l.b16 %v66
  %v792 = vunpack.c.h.b16 %v66
  %v793 = vunpack.c.l.b16 %v67
  %v794 = vunpack.c.l.b16 %v68
  %v795 = vunpack.c.h.b16 %v68
  %v796 = vunpack.c.l.b16 %v69
  %v797 = vunpack.c.l.b16 %v70
  %v798 = vunpack.c.h.b16 %v70
  %v799 = vunpack.c.l.b16 %v71
  %v800 = vunpack.c.l.b16 %v72
  %v801 = vunpack.c.h.b16 %v72
  %v802 = vunpack.c.l.b16 %v73
  %v803 = vunpack.c.l.b16 %v74
  %v804 = vunpack.c.h.b16 %v74
  %v805 = vunpack.c.l.b16 %v75
  %v806 = vunpack.c.l.b16 %v76
  %v807 = vunpack.c.h.b16 %v76
  %v808 = vunpack.c.l.b16 %v77
  %v809 = vunpack.c.l.b16 %v78
  %v810 = vunpack.c.h.b16 %v78
  %v811 = vunpack.c.l.b16 %v79
  %v812 = vunpack.c.l.b16 %v80
  %v813 = vunpack.c.h.b16 %v80
  %v814 = vunpack.c.l.b16 %v81
  %v815 = vunpack.c.l.b16 %v82
  %v816 = vunpack.c.h.b16 %v82
  %v817 = vunpack.c.l.b16 %v83
  %v818 = vunpack.c.l.b16 %v84
  %v819 = vunpack.c.h.b16 %v84
  %v820 = vunpack.c.l.b16 %v85
  %v821 = vunpack.c.l.b16 %v86
  %v822 = vunpack.c.h.b16 %v86
  %v823 = vunpack.c.l.b16 %v87
  %v824 = vunpack.c.l.b16 %v88
  %v825 = vunpack.c.h.b16 %v88
  %v826 = vunpack.c.l.b16 %v89
  %v827 = vunpack.c.l.b16 %v90
  %v828 = vunpack.c.h.b16 %v90
  %v829 = vunpack.c.l.b16 %v91
  %v830 = vunpack.c.l.b16 %v92
  %v831 = vunpack.c.h.b16 %v92
  %v832 = vunpack.c.l.b16 %v93
  %v833 = vunpack.c.l.b16 %v94
  %v834 = vunpack.c.h.b16 %v94
  %v835 = vunpack.c.l.b16 %v95
  %v836 = vunpack.c.l.b16 %v96
  %v837 = vunpack.c.h.b16 %v96
  %v838 = vunpack.c.l.b16 %v97
  %v839 = vunpack.c.l.b16 %v98
  %v840 = vunpack.c.h.b16 %v98
  %v841 = vunpack.c.l.b16 %v99
  %v842 = vunpack.c.l.b16 %v100
  %v843 = vunpack.c.h.b16 %v100
  %v844 = vunpack.c.l.b16 %v101
  %v845 = vunpack.c.l.b16 %v102
  %v846 = vunpack.c.h.b16 %v102
  %v847 = vunpack.c.l.b16 %v103
  %v848 = vunpack.c.l.b16 %v104
  %v849 = vunpack.c.h.b16 %v104
  %v850 = vunpack.c.l.b16 %v105
  %v851 = vunpack.c.l.b16 %v106
  %v852 = vunpack.c.h.b16 %v106
  %v853 = vunpack.c.l.b16 %v107
  %v854 = vunpack.c.l.b16 %v108
  %v855 = vunpack.c.h.b16 %v108
  %v856 = vunpack.c.l.b16 %v109
  %v857 = vunpack.c.l.b16 %v110
  %v858 = vunpack.c.h.b16 %v110
  %v859 = vunpack.c.l.b16 %v111
  %v860 = vunpack.c.l.b16 %v112
  %v861 = vunpack.c.h.b16 %v112
  %v862 = vunpack.c.l.b16 %v113
  %v863 = vunpack.c.l.b16 %v114
  %v864 = vunpack.c.h.b16 %v114
  %v865 = vunpack.c.l.b16 %v115
  %v866 = vunpack.c.l.b16 %v116
  %v867 = vunpack.c.h.b16 %v116
  %v868 = vunpack.c.l.b16 %v117
  %v869 = vunpack.c.l.b16 %v118
  %v870 = vunpack.c.h.b16 %v118
  %v871 = vunpack.c.l.b16 %v119
  %v872 = vpack.c.b16 %v731, %v728
  %v873 = vpack.c.b16 %v732, %v729
  %v874 = vpack.c.b16 %v733, %v730
  %v875 = vpack.c.b16 %v737, %v734
  %v876 = vpack.c.b16 %v738, %v735
  %v877 = vpack.c.b16 %v739, %v736
  %v878 = vpack.c.b16 %v743, %v740
  %v879 = vpack.c.b16 %v744, %v741
  %v880 = vpack.c.b16 %v745, %v742
  %v881 = vpack.c.b16 %v749, %v746
  %v882 = vpack.c.b16 %v750, %v747
  %v883 = vpack.c.b16 %v751, %v748
  %v884 = vpack.c.b16 %v755, %v752
  %v885 = vpack.c.b16 %v756, %v753
  %v886 = vpack.c.b16 %v757, %v754
  %v887 = vpack.c.b16 %v761, %v758
  %v888 = vpack.c.b16 %v762, %v759
  %v889 = vpack.c.b16 %v763, %v760
  %v890 = vpack.c.b16 %v767, %v764
  %v891 = vpack.c.b16 %v768, %v765
  %v892 = vpack.c.b16 %v769, %v766
  %v893 = vpack.c.b16 %v773, %v770
  %v894 = vpack.c.b16 %v774, %v771
  %v895 = vpack.c.b16 %v775, %v772
  %v896 = vpack.c.b16 %v779, %v776
  %v897 = vpack.c.b16 %v780, %v777
  %v898 = vpack.c.b16 %v781, %v778
  %v899 = vpack.c.b16 %v785, %v782
  %v900 = vpack.c.b16 %v786, %v783
  %v901 = vpack.c.b16 %v787, %v784
  %v902 = vpack.c.b16 %v791, %v788
  %v903 = vpack.c.b16 %v792, %v789
  %v904 = vpack.c.b16 %v793, %v790
  %v905 = vpack.c.b16 %v797, %v794
  %v906 = vpack.c.b16 %v798, %v795
  %v907 = vpack.c.b16 %v799, %v796
  %v908 = vpack.c.b16 %v803, %v800
  %v909 = vpack.c.b16 %v804, %v801
  %v910 = vpack.c.b16 %v805, %v802
  %v911 = vpack.c.b16 %v809, %v806
  %v912 = vpack.c.b16 %v810, %v807
  %v913 = vpack.c.b16 %v811, %v808
  %v914 = vpack.c.b16 %v815, %v812
  %v915 = vpack.c.b16 %v816, %v813
  %v916 = vpack.c.b16 %v817, %v814
  %v917 = vpack.c.b16 %v821, %v818
  %v918 = vpack.c.b16 %v822, %v819
  %v919 = vpack.c.b16 %v823, %v820
  %v920 = vpack.c.b16 %v827, %v824
  %v921 = vpack.c.b16 %v828, %v825
  %v922 = vpack.c.b16 %v829, %v826
  %v923 = vpack.c.b16 %v833, %v830
  %v924 = vpack.c.b16 %v834, %v831
  %v925 = vpack.c.b16 %v835, %v832
  %v926 = vpack.c.b16 %v839, %v836
  %v927 = vpack.c.b16 %v840, %v837
  %v928 = vpack.c.b16 %v841, %v838
  %v929 = vpack.c.b16 %v845, %v842
  %v930 = vpack.c.b16 %v846, %v843
  %v931 = vpack.c.b16 %v847, %v844
  %v932 = vpack.c.b16 %v851, %v848
  %v933 = vpack.c.b16 %v852, %v849
  %v934 = vpack.c.b16 %v853, %v850
  %v935 = vpack.c.b16 %v857, %v854
  %v936 = vpack.c.b16 %v858, %v855
  %v937 = vpack.c.b16 %v859, %v856
  %v938 = vpack.c.b16 %v863, %v860
  %v939 = vpack.c.b16 %v864, %v861
  %v940 = vpack.c.b16 %v865, %v862
  %v941 = vpack.c.b16 %v869, %v866
  %v942 = vpack.c.b16 %v870, %v867
  %v943 = vpack.c.b16 %v871, %v868
  %1016 = vmatprep.subr.bf16.mxu0 0
  %1017 = vmatpush1.bf16.msra.mxu0 %v608
  %1018 = vmatprep.subr.bf16.mxu0 0
  %1019 = vmatpush1.bf16.msra.mxu0 %v607
  %1020 = vmatprep.subr.bf16.mxu0 0
  %1021 = vmatpush1.bf16.msra.mxu0 %v606
  %1022 = vmatprep.subr.bf16.mxu0 0
  %1023 = vmatpush1.bf16.msra.mxu0 %v605
  %1024 = vmatprep.subr.bf16.mxu0 0
  %1025 = vmatpush1.bf16.msra.mxu0 %v604
  %1026 = vmatprep.subr.bf16.mxu0 0
  %1027 = vmatpush1.bf16.msra.mxu0 %v603
  %1028 = vmatprep.subr.bf16.mxu0 0
  %1029 = vmatpush1.bf16.msra.mxu0 %v602
  %1030 = vmatprep.subr.bf16.mxu0 0
  %1031 = vmatpush1.bf16.msra.mxu0 %v601
  %1032 = vmatprep.subr.bf16.mxu0 0
  %1033 = vmatpush2.bf16.msra.mxu0 %v616
  %1034 = vmatprep.subr.bf16.mxu0 0
  %1035 = vmatpush2.bf16.msra.mxu0 %v615
  %1036 = vmatprep.subr.bf16.mxu0 0
  %1037 = vmatpush2.bf16.msra.mxu0 %v614
  %1038 = vmatprep.subr.bf16.mxu0 0
  %1039 = vmatpush2.bf16.msra.mxu0 %v613
  %1040 = vmatprep.subr.bf16.mxu0 0
  %1041 = vmatpush2.bf16.msra.mxu0 %v612
  %1042 = vmatprep.subr.bf16.mxu0 0
  %1043 = vmatpush2.bf16.msra.mxu0 %v611
  %1044 = vmatprep.subr.bf16.mxu0 0
  %1045 = vmatpush2.bf16.msra.mxu0 %v610
  %1046 = vmatprep.subr.bf16.mxu0 0
  %1047 = vmatpush2.bf16.msra.mxu0 %v609
  %1048 = vmatprep.mubr.bf16.mxu0 %v873
  %1049 = vmatmul.mubr.bf16.gmra.mxu0 %v872
  %v1050 = vpop.f32.mrf.mxu0
  %v1051 = vadd.f32 %v630, %v1050
  %v1052 = vpop.f32.mrf.mxu0
  %v1053 = vpop.f32.mrf.mxu0
  %v1054 = vadd.f32 %v630, %v1053
  %v1055 = vpop.f32.mrf.mxu0
  %1056 = vmatprep.mubr.bf16.mxu0 %v876
  %1057 = vmatmul.mubr.bf16.gmra.mxu0 %v875
  %v1058 = vpop.f32.mrf.mxu0
  %v1059 = vadd.f32 %v630, %v1058
  %v1060 = vpop.f32.mrf.mxu0
  %v1061 = vpop.f32.mrf.mxu0
  %v1062 = vadd.f32 %v630, %v1061
  %v1063 = vpop.f32.mrf.mxu0
  %1064 = vmatprep.mubr.bf16.mxu0 %v879
  %1065 = vmatmul.mubr.bf16.gmra.mxu0 %v878
  %v1066 = vpop.f32.mrf.mxu0
  %v1067 = vadd.f32 %v630, %v1066
  %v1068 = vpop.f32.mrf.mxu0
  %v1069 = vpop.f32.mrf.mxu0
  %v1070 = vadd.f32 %v630, %v1069
  %v1071 = vpop.f32.mrf.mxu0
  %1072 = vmatprep.mubr.bf16.mxu0 %v882
  %1073 = vmatmul.mubr.bf16.gmra.mxu0 %v881
  %v1074 = vpop.f32.mrf.mxu0
  %v1075 = vadd.f32 %v630, %v1074
  %v1076 = vpop.f32.mrf.mxu0
  %v1077 = vpop.f32.mrf.mxu0
  %v1078 = vadd.f32 %v630, %v1077
  %v1079 = vpop.f32.mrf.mxu0
  %1080 = vmatprep.mubr.bf16.mxu0 %v885
  %1081 = vmatmul.mubr.bf16.gmra.mxu0 %v884
  %v1082 = vpop.f32.mrf.mxu0
  %v1083 = vadd.f32 %v630, %v1082
  %v1084 = vpop.f32.mrf.mxu0
  %v1085 = vpop.f32.mrf.mxu0
  %v1086 = vadd.f32 %v630, %v1085
  %v1087 = vpop.f32.mrf.mxu0
  %1088 = vmatprep.mubr.bf16.mxu0 %v888
  %1089 = vmatmul.mubr.bf16.gmra.mxu0 %v887
  %v1090 = vpop.f32.mrf.mxu0
  %v1091 = vadd.f32 %v630, %v1090
  %v1092 = vpop.f32.mrf.mxu0
  %v1093 = vpop.f32.mrf.mxu0
  %v1094 = vadd.f32 %v630, %v1093
  %v1095 = vpop.f32.mrf.mxu0
  %1096 = vmatprep.mubr.bf16.mxu0 %v891
  %1097 = vmatmul.mubr.bf16.gmra.mxu0 %v890
  %v1098 = vpop.f32.mrf.mxu0
  %v1099 = vadd.f32 %v630, %v1098
  %v1100 = vpop.f32.mrf.mxu0
  %v1101 = vpop.f32.mrf.mxu0
  %v1102 = vadd.f32 %v630, %v1101
  %v1103 = vpop.f32.mrf.mxu0
  %1104 = vmatprep.mubr.bf16.mxu0 %v894
  %1105 = vmatmul.mubr.bf16.gmra.mxu0 %v893
  %v1106 = vpop.f32.mrf.mxu0
  %v1107 = vadd.f32 %v630, %v1106
  %v1108 = vpop.f32.mrf.mxu0
  %v1109 = vpop.f32.mrf.mxu0
  %v1110 = vadd.f32 %v630, %v1109
  %v1111 = vpop.f32.mrf.mxu0
  %1112 = vmatprep.mubr.bf16.mxu0 %v897
  %1113 = vmatmul.mubr.bf16.gmra.mxu0 %v896
  %v1114 = vpop.f32.mrf.mxu0
  %v1115 = vadd.f32 %v630, %v1114
  %v1116 = vpop.f32.mrf.mxu0
  %v1117 = vpop.f32.mrf.mxu0
  %v1118 = vadd.f32 %v630, %v1117
  %v1119 = vpop.f32.mrf.mxu0
  %1120 = vmatprep.mubr.bf16.mxu0 %v900
  %1121 = vmatmul.mubr.bf16.gmra.mxu0 %v899
  %v1122 = vpop.f32.mrf.mxu0
  %v1123 = vadd.f32 %v630, %v1122
  %v1124 = vpop.f32.mrf.mxu0
  %v1125 = vpop.f32.mrf.mxu0
  %v1126 = vadd.f32 %v630, %v1125
  %v1127 = vpop.f32.mrf.mxu0
  %1128 = vmatprep.mubr.bf16.mxu0 %v903
  %1129 = vmatmul.mubr.bf16.gmra.mxu0 %v902
  %v1130 = vpop.f32.mrf.mxu0
  %v1131 = vadd.f32 %v630, %v1130
  %v1132 = vpop.f32.mrf.mxu0
  %v1133 = vpop.f32.mrf.mxu0
  %v1134 = vadd.f32 %v630, %v1133
  %v1135 = vpop.f32.mrf.mxu0
  %1136 = vmatprep.mubr.bf16.mxu0 %v906
  %1137 = vmatmul.mubr.bf16.gmra.mxu0 %v905
  %v1138 = vpop.f32.mrf.mxu0
  %v1139 = vadd.f32 %v630, %v1138
  %v1140 = vpop.f32.mrf.mxu0
  %v1141 = vpop.f32.mrf.mxu0
  %v1142 = vadd.f32 %v630, %v1141
  %v1143 = vpop.f32.mrf.mxu0
  %1144 = vmatprep.mubr.bf16.mxu0 %v909
  %1145 = vmatmul.mubr.bf16.gmra.mxu0 %v908
  %v1146 = vpop.f32.mrf.mxu0
  %v1147 = vadd.f32 %v630, %v1146
  %v1148 = vpop.f32.mrf.mxu0
  %v1149 = vpop.f32.mrf.mxu0
  %v1150 = vadd.f32 %v630, %v1149
  %v1151 = vpop.f32.mrf.mxu0
  %1152 = vmatprep.mubr.bf16.mxu0 %v912
  %1153 = vmatmul.mubr.bf16.gmra.mxu0 %v911
  %v1154 = vpop.f32.mrf.mxu0
  %v1155 = vadd.f32 %v630, %v1154
  %v1156 = vpop.f32.mrf.mxu0
  %v1157 = vpop.f32.mrf.mxu0
  %v1158 = vadd.f32 %v630, %v1157
  %v1159 = vpop.f32.mrf.mxu0
  %1160 = vmatprep.mubr.bf16.mxu0 %v915
  %1161 = vmatmul.mubr.bf16.gmra.mxu0 %v914
  %v1162 = vpop.f32.mrf.mxu0
  %v1163 = vadd.f32 %v630, %v1162
  %v1164 = vpop.f32.mrf.mxu0
  %v1165 = vpop.f32.mrf.mxu0
  %v1166 = vadd.f32 %v630, %v1165
  %v1167 = vpop.f32.mrf.mxu0
  %1168 = vmatprep.mubr.bf16.mxu0 %v918
  %1169 = vmatmul.mubr.bf16.gmra.mxu0 %v917
  %v1170 = vpop.f32.mrf.mxu0
  %v1171 = vadd.f32 %v630, %v1170
  %v1172 = vpop.f32.mrf.mxu0
  %v1173 = vpop.f32.mrf.mxu0
  %v1174 = vadd.f32 %v630, %v1173
  %v1175 = vpop.f32.mrf.mxu0
  %1176 = vmatprep.mubr.bf16.mxu0 %v921
  %1177 = vmatmul.mubr.bf16.gmra.mxu0 %v920
  %v1178 = vpop.f32.mrf.mxu0
  %v1179 = vadd.f32 %v630, %v1178
  %v1180 = vpop.f32.mrf.mxu0
  %v1181 = vpop.f32.mrf.mxu0
  %v1182 = vadd.f32 %v630, %v1181
  %v1183 = vpop.f32.mrf.mxu0
  %1184 = vmatprep.mubr.bf16.mxu0 %v924
  %1185 = vmatmul.mubr.bf16.gmra.mxu0 %v923
  %v1186 = vpop.f32.mrf.mxu0
  %v1187 = vadd.f32 %v630, %v1186
  %v1188 = vpop.f32.mrf.mxu0
  %v1189 = vpop.f32.mrf.mxu0
  %v1190 = vadd.f32 %v630, %v1189
  %v1191 = vpop.f32.mrf.mxu0
  %1192 = vmatprep.mubr.bf16.mxu0 %v927
  %1193 = vmatmul.mubr.bf16.gmra.mxu0 %v926
  %v1194 = vpop.f32.mrf.mxu0
  %v1195 = vadd.f32 %v630, %v1194
  %v1196 = vpop.f32.mrf.mxu0
  %v1197 = vpop.f32.mrf.mxu0
  %v1198 = vadd.f32 %v630, %v1197
  %v1199 = vpop.f32.mrf.mxu0
  %1200 = vmatprep.mubr.bf16.mxu0 %v930
  %1201 = vmatmul.mubr.bf16.gmra.mxu0 %v929
  %v1202 = vpop.f32.mrf.mxu0
  %v1203 = vadd.f32 %v630, %v1202
  %v1204 = vpop.f32.mrf.mxu0
  %v1205 = vpop.f32.mrf.mxu0
  %v1206 = vadd.f32 %v630, %v1205
  %v1207 = vpop.f32.mrf.mxu0
  %1208 = vmatprep.mubr.bf16.mxu0 %v933
  %1209 = vmatmul.mubr.bf16.gmra.mxu0 %v932
  %v1210 = vpop.f32.mrf.mxu0
  %v1211 = vadd.f32 %v630, %v1210
  %v1212 = vpop.f32.mrf.mxu0
  %v1213 = vpop.f32.mrf.mxu0
  %v1214 = vadd.f32 %v630, %v1213
  %v1215 = vpop.f32.mrf.mxu0
  %1216 = vmatprep.mubr.bf16.mxu0 %v936
  %1217 = vmatmul.mubr.bf16.gmra.mxu0 %v935
  %v1218 = vpop.f32.mrf.mxu0
  %v1219 = vadd.f32 %v630, %v1218
  %v1220 = vpop.f32.mrf.mxu0
  %v1221 = vpop.f32.mrf.mxu0
  %v1222 = vadd.f32 %v630, %v1221
  %v1223 = vpop.f32.mrf.mxu0
  %1224 = vmatprep.mubr.bf16.mxu0 %v939
  %1225 = vmatmul.mubr.bf16.gmra.mxu0 %v938
  %v1226 = vpop.f32.mrf.mxu0
  %v1227 = vadd.f32 %v630, %v1226
  %v1228 = vpop.f32.mrf.mxu0
  %v1229 = vpop.f32.mrf.mxu0
  %v1230 = vadd.f32 %v630, %v1229
  %v1231 = vpop.f32.mrf.mxu0
  %1232 = vmatprep.mubr.bf16.mxu0 %v942
  %1233 = vmatmul.mubr.bf16.gmra.mxu0 %v941
  %v1234 = vpop.f32.mrf.mxu0
  %v1235 = vadd.f32 %v630, %v1234
  %v1236 = vpop.f32.mrf.mxu0
  %v1237 = vpop.f32.mrf.mxu0
  %v1238 = vadd.f32 %v630, %v1237
  %v1239 = vpop.f32.mrf.mxu0
  %1240 = vdwg.mxu0
  %1241 = vmatprep.subr.bf16.mxu0 0
  %1242 = vmatpush1.bf16.msra.mxu0 %v624
  %1243 = vmatprep.subr.bf16.mxu0 0
  %1244 = vmatpush1.bf16.msra.mxu0 %v623
  %1245 = vmatprep.subr.bf16.mxu0 0
  %1246 = vmatpush1.bf16.msra.mxu0 %v622
  %1247 = vmatprep.subr.bf16.mxu0 0
  %1248 = vmatpush1.bf16.msra.mxu0 %v621
  %1249 = vmatprep.subr.bf16.mxu0 0
  %1250 = vmatpush1.bf16.msra.mxu0 %v620
  %1251 = vmatprep.subr.bf16.mxu0 0
  %1252 = vmatpush1.bf16.msra.mxu0 %v619
  %1253 = vmatprep.subr.bf16.mxu0 0
  %1254 = vmatpush1.bf16.msra.mxu0 %v618
  %1255 = vmatprep.subr.bf16.mxu0 0
  %1256 = vmatpush1.bf16.msra.mxu0 %v617
  %1257 = vmatprep.subr.bf16.mxu0 0
  %1258 = vmatpush2.bf16.msra.mxu0 0
  %1259 = vmatprep.subr.bf16.mxu0 0
  %1260 = vmatpush2.bf16.msra.mxu0 0
  %1261 = vmatprep.subr.bf16.mxu0 0
  %1262 = vmatpush2.bf16.msra.mxu0 0
  %1263 = vmatprep.subr.bf16.mxu0 0
  %1264 = vmatpush2.bf16.msra.mxu0 0
  %1265 = vmatprep.subr.bf16.mxu0 0
  %1266 = vmatpush2.bf16.msra.mxu0 0
  %1267 = vmatprep.subr.bf16.mxu0 0
  %1268 = vmatpush2.bf16.msra.mxu0 0
  %1269 = vmatprep.subr.bf16.mxu0 0
  %1270 = vmatpush2.bf16.msra.mxu0 0
  %1271 = vmatprep.subr.bf16.mxu0 0
  %1272 = vmatpush2.bf16.msra.mxu0 0
  %1273 = vmatprep.mubr.bf16.mxu0 0
  %1274 = vmatmul.mubr.bf16.gmra.mxu0 %v874
  %v1275 = vpop.f32.mrf.mxu0
  %v1276 = vadd.f32 %v1051, %v1275
  %v1277 = vpop.f32.mrf.mxu0
  %v1278 = vpop.f32.mrf.mxu0
  %v1279 = vadd.f32 %v1054, %v1278
  %v1280 = vpop.f32.mrf.mxu0
  %1281 = vmatprep.mubr.bf16.mxu0 0
  %1282 = vmatmul.mubr.bf16.gmra.mxu0 %v877
  %v1283 = vpop.f32.mrf.mxu0
  %v1284 = vadd.f32 %v1059, %v1283
  %v1285 = vpop.f32.mrf.mxu0
  %v1286 = vpop.f32.mrf.mxu0
  %v1287 = vadd.f32 %v1062, %v1286
  %v1288 = vpop.f32.mrf.mxu0
  %1289 = vmatprep.mubr.bf16.mxu0 0
  %1290 = vmatmul.mubr.bf16.gmra.mxu0 %v880
  %v1291 = vpop.f32.mrf.mxu0
  %v1292 = vadd.f32 %v1067, %v1291
  %v1293 = vpop.f32.mrf.mxu0
  %v1294 = vpop.f32.mrf.mxu0
  %v1295 = vadd.f32 %v1070, %v1294
  %v1296 = vpop.f32.mrf.mxu0
  %1297 = vmatprep.mubr.bf16.mxu0 0
  %1298 = vmatmul.mubr.bf16.gmra.mxu0 %v883
  %v1299 = vpop.f32.mrf.mxu0
  %v1300 = vadd.f32 %v1075, %v1299
  %v1301 = vpop.f32.mrf.mxu0
  %v1302 = vpop.f32.mrf.mxu0
  %v1303 = vadd.f32 %v1078, %v1302
  %v1304 = vpop.f32.mrf.mxu0
  %1305 = vmatprep.mubr.bf16.mxu0 0
  %1306 = vmatmul.mubr.bf16.gmra.mxu0 %v886
  %v1307 = vpop.f32.mrf.mxu0
  %v1308 = vadd.f32 %v1083, %v1307
  %v1309 = vpop.f32.mrf.mxu0
  %v1310 = vpop.f32.mrf.mxu0
  %v1311 = vadd.f32 %v1086, %v1310
  %v1312 = vpop.f32.mrf.mxu0
  %1313 = vmatprep.mubr.bf16.mxu0 0
  %1314 = vmatmul.mubr.bf16.gmra.mxu0 %v889
  %v1315 = vpop.f32.mrf.mxu0
  %v1316 = vadd.f32 %v1091, %v1315
  %v1317 = vpop.f32.mrf.mxu0
  %v1318 = vpop.f32.mrf.mxu0
  %v1319 = vadd.f32 %v1094, %v1318
  %v1320 = vpop.f32.mrf.mxu0
  %1321 = vmatprep.mubr.bf16.mxu0 0
  %1322 = vmatmul.mubr.bf16.gmra.mxu0 %v892
  %v1323 = vpop.f32.mrf.mxu0
  %v1324 = vadd.f32 %v1099, %v1323
  %v1325 = vpop.f32.mrf.mxu0
  %v1326 = vpop.f32.mrf.mxu0
  %v1327 = vadd.f32 %v1102, %v1326
  %v1328 = vpop.f32.mrf.mxu0
  %1329 = vmatprep.mubr.bf16.mxu0 0
  %1330 = vmatmul.mubr.bf16.gmra.mxu0 %v895
  %v1331 = vpop.f32.mrf.mxu0
  %v1332 = vadd.f32 %v1107, %v1331
  %v1333 = vpop.f32.mrf.mxu0
  %v1334 = vpop.f32.mrf.mxu0
  %v1335 = vadd.f32 %v1110, %v1334
  %v1336 = vpop.f32.mrf.mxu0
  %1337 = vmatprep.mubr.bf16.mxu0 0
  %1338 = vmatmul.mubr.bf16.gmra.mxu0 %v898
  %v1339 = vpop.f32.mrf.mxu0
  %v1340 = vadd.f32 %v1115, %v1339
  %v1341 = vpop.f32.mrf.mxu0
  %v1342 = vpop.f32.mrf.mxu0
  %v1343 = vadd.f32 %v1118, %v1342
  %v1344 = vpop.f32.mrf.mxu0
  %1345 = vmatprep.mubr.bf16.mxu0 0
  %1346 = vmatmul.mubr.bf16.gmra.mxu0 %v901
  %v1347 = vpop.f32.mrf.mxu0
  %v1348 = vadd.f32 %v1123, %v1347
  %v1349 = vpop.f32.mrf.mxu0
  %v1350 = vpop.f32.mrf.mxu0
  %v1351 = vadd.f32 %v1126, %v1350
  %v1352 = vpop.f32.mrf.mxu0
  %1353 = vmatprep.mubr.bf16.mxu0 0
  %1354 = vmatmul.mubr.bf16.gmra.mxu0 %v904
  %v1355 = vpop.f32.mrf.mxu0
  %v1356 = vadd.f32 %v1131, %v1355
  %v1357 = vpop.f32.mrf.mxu0
  %v1358 = vpop.f32.mrf.mxu0
  %v1359 = vadd.f32 %v1134, %v1358
  %v1360 = vpop.f32.mrf.mxu0
  %1361 = vmatprep.mubr.bf16.mxu0 0
  %1362 = vmatmul.mubr.bf16.gmra.mxu0 %v907
  %v1363 = vpop.f32.mrf.mxu0
  %v1364 = vadd.f32 %v1139, %v1363
  %v1365 = vpop.f32.mrf.mxu0
  %v1366 = vpop.f32.mrf.mxu0
  %v1367 = vadd.f32 %v1142, %v1366
  %v1368 = vpop.f32.mrf.mxu0
  %1369 = vmatprep.mubr.bf16.mxu0 0
  %1370 = vmatmul.mubr.bf16.gmra.mxu0 %v910
  %v1371 = vpop.f32.mrf.mxu0
  %v1372 = vadd.f32 %v1147, %v1371
  %v1373 = vpop.f32.mrf.mxu0
  %v1374 = vpop.f32.mrf.mxu0
  %v1375 = vadd.f32 %v1150, %v1374
  %v1376 = vpop.f32.mrf.mxu0
  %1377 = vmatprep.mubr.bf16.mxu0 0
  %1378 = vmatmul.mubr.bf16.gmra.mxu0 %v913
  %v1379 = vpop.f32.mrf.mxu0
  %v1380 = vadd.f32 %v1155, %v1379
  %v1381 = vpop.f32.mrf.mxu0
  %v1382 = vpop.f32.mrf.mxu0
  %v1383 = vadd.f32 %v1158, %v1382
  %v1384 = vpop.f32.mrf.mxu0
  %1385 = vmatprep.mubr.bf16.mxu0 0
  %1386 = vmatmul.mubr.bf16.gmra.mxu0 %v916
  %v1387 = vpop.f32.mrf.mxu0
  %v1388 = vadd.f32 %v1163, %v1387
  %v1389 = vpop.f32.mrf.mxu0
  %v1390 = vpop.f32.mrf.mxu0
  %v1391 = vadd.f32 %v1166, %v1390
  %v1392 = vpop.f32.mrf.mxu0
  %1393 = vmatprep.mubr.bf16.mxu0 0
  %1394 = vmatmul.mubr.bf16.gmra.mxu0 %v919
  %v1395 = vpop.f32.mrf.mxu0
  %v1396 = vadd.f32 %v1171, %v1395
  %v1397 = vpop.f32.mrf.mxu0
  %v1398 = vpop.f32.mrf.mxu0
  %v1399 = vadd.f32 %v1174, %v1398
  %v1400 = vpop.f32.mrf.mxu0
  %1401 = vmatprep.mubr.bf16.mxu0 0
  %1402 = vmatmul.mubr.bf16.gmra.mxu0 %v922
  %v1403 = vpop.f32.mrf.mxu0
  %v1404 = vadd.f32 %v1179, %v1403
  %v1405 = vpop.f32.mrf.mxu0
  %v1406 = vpop.f32.mrf.mxu0
  %v1407 = vadd.f32 %v1182, %v1406
  %v1408 = vpop.f32.mrf.mxu0
  %1409 = vmatprep.mubr.bf16.mxu0 0
  %1410 = vmatmul.mubr.bf16.gmra.mxu0 %v925
  %v1411 = vpop.f32.mrf.mxu0
  %v1412 = vadd.f32 %v1187, %v1411
  %v1413 = vpop.f32.mrf.mxu0
  %v1414 = vpop.f32.mrf.mxu0
  %v1415 = vadd.f32 %v1190, %v1414
  %v1416 = vpop.f32.mrf.mxu0
  %1417 = vmatprep.mubr.bf16.mxu0 0
  %1418 = vmatmul.mubr.bf16.gmra.mxu0 %v928
  %v1419 = vpop.f32.mrf.mxu0
  %v1420 = vadd.f32 %v1195, %v1419
  %v1421 = vpop.f32.mrf.mxu0
  %v1422 = vpop.f32.mrf.mxu0
  %v1423 = vadd.f32 %v1198, %v1422
  %v1424 = vpop.f32.mrf.mxu0
  %1425 = vmatprep.mubr.bf16.mxu0 0
  %1426 = vmatmul.mubr.bf16.gmra.mxu0 %v931
  %v1427 = vpop.f32.mrf.mxu0
  %v1428 = vadd.f32 %v1203, %v1427
  %v1429 = vpop.f32.mrf.mxu0
  %v1430 = vpop.f32.mrf.mxu0
  %v1431 = vadd.f32 %v1206, %v1430
  %v1432 = vpop.f32.mrf.mxu0
  %1433 = vmatprep.mubr.bf16.mxu0 0
  %1434 = vmatmul.mubr.bf16.gmra.mxu0 %v934
  %v1435 = vpop.f32.mrf.mxu0
  %v1436 = vadd.f32 %v1211, %v1435
  %v1437 = vpop.f32.mrf.mxu0
  %v1438 = vpop.f32.mrf.mxu0
  %v1439 = vadd.f32 %v1214, %v1438
  %v1440 = vpop.f32.mrf.mxu0
  %1441 = vmatprep.mubr.bf16.mxu0 0
  %1442 = vmatmul.mubr.bf16.gmra.mxu0 %v937
  %v1443 = vpop.f32.mrf.mxu0
  %v1444 = vadd.f32 %v1219, %v1443
  %v1445 = vpop.f32.mrf.mxu0
  %v1446 = vpop.f32.mrf.mxu0
  %v1447 = vadd.f32 %v1222, %v1446
  %v1448 = vpop.f32.mrf.mxu0
  %1449 = vmatprep.mubr.bf16.mxu0 0
  %1450 = vmatmul.mubr.bf16.gmra.mxu0 %v940
  %v1451 = vpop.f32.mrf.mxu0
  %v1452 = vadd.f32 %v1227, %v1451
  %v1453 = vpop.f32.mrf.mxu0
  %v1454 = vpop.f32.mrf.mxu0
  %v1455 = vadd.f32 %v1230, %v1454
  %v1456 = vpop.f32.mrf.mxu0
  %1457 = vmatprep.mubr.bf16.mxu0 0
  %1458 = vmatmul.mubr.bf16.gmra.mxu0 %v943
  %v1459 = vpop.f32.mrf.mxu0
  %v1460 = vadd.f32 %v1235, %v1459
  %v1461 = vpop.f32.mrf.mxu0
  %v1462 = vpop.f32.mrf.mxu0
  %v1463 = vadd.f32 %v1238, %v1462
  %v1464 = vpop.f32.mrf.mxu0
  %1465 = vdwg.mxu0
  %v1466 = vmax.f32 %v1276, 0.0
  %v1467 = vmax.f32 %v1279, 0.0
  %v1468 = vmax.f32 %v1284, 0.0
  %v1469 = vmax.f32 %v1287, 0.0
  %v1470 = vmax.f32 %v1292, 0.0
  %v1471 = vmax.f32 %v1295, 0.0
  %v1472 = vmax.f32 %v1300, 0.0
  %v1473 = vmax.f32 %v1303, 0.0
  %v1474 = vmax.f32 %v1308, 0.0
  %v1475 = vmax.f32 %v1311, 0.0
  %v1476 = vmax.f32 %v1316, 0.0
  %v1477 = vmax.f32 %v1319, 0.0
  %v1478 = vmax.f32 %v1324, 0.0
  %v1479 = vmax.f32 %v1327, 0.0
  %v1480 = vmax.f32 %v1332, 0.0
  %v1481 = vmax.f32 %v1335, 0.0
  %v1482 = vmax.f32 %v1340, 0.0
  %v1483 = vmax.f32 %v1343, 0.0
  %v1484 = vmax.f32 %v1348, 0.0
  %v1485 = vmax.f32 %v1351, 0.0
  %v1486 = vmax.f32 %v1356, 0.0
  %v1487 = vmax.f32 %v1359, 0.0
  %v1488 = vmax.f32 %v1364, 0.0
  %v1489 = vmax.f32 %v1367, 0.0
  %v1490 = vmax.f32 %v1372, 0.0
  %v1491 = vmax.f32 %v1375, 0.0
  %v1492 = vmax.f32 %v1380, 0.0
  %v1493 = vmax.f32 %v1383, 0.0
  %v1494 = vmax.f32 %v1388, 0.0
  %v1495 = vmax.f32 %v1391, 0.0
  %v1496 = vmax.f32 %v1396, 0.0
  %v1497 = vmax.f32 %v1399, 0.0
  %v1498 = vmax.f32 %v1404, 0.0
  %v1499 = vmax.f32 %v1407, 0.0
  %v1500 = vmax.f32 %v1412, 0.0
  %v1501 = vmax.f32 %v1415, 0.0
  %v1502 = vmax.f32 %v1420, 0.0
  %v1503 = vmax.f32 %v1423, 0.0
  %v1504 = vmax.f32 %v1428, 0.0
  %v1505 = vmax.f32 %v1431, 0.0
  %v1506 = vmax.f32 %v1436, 0.0
  %v1507 = vmax.f32 %v1439, 0.0
  %v1508 = vmax.f32 %v1444, 0.0
  %v1509 = vmax.f32 %v1447, 0.0
  %v1510 = vmax.f32 %v1452, 0.0
  %v1511 = vmax.f32 %v1455, 0.0
  %v1512 = vmax.f32 %v1460, 0.0
  %v1513 = vmax.f32 %v1463, 0.0
  %v1514 = vpack.c.bf16 %v1467, %v1466
  %v1515 = vpack.c.bf16 %v1469, %v1468
  %v1516 = vpack.c.bf16 %v1471, %v1470
  %v1517 = vpack.c.bf16 %v1473, %v1472
  %v1518 = vpack.c.bf16 %v1475, %v1474
  %v1519 = vpack.c.bf16 %v1477, %v1476
  %v1520 = vpack.c.bf16 %v1479, %v1478
  %v1521 = vpack.c.bf16 %v1481, %v1480
  %v1522 = vpack.c.bf16 %v1483, %v1482
  %v1523 = vpack.c.bf16 %v1485, %v1484
  %v1524 = vpack.c.bf16 %v1487, %v1486
  %v1525 = vpack.c.bf16 %v1489, %v1488
  %v1526 = vpack.c.bf16 %v1491, %v1490
  %v1527 = vpack.c.bf16 %v1493, %v1492
  %v1528 = vpack.c.bf16 %v1495, %v1494
  %v1529 = vpack.c.bf16 %v1497, %v1496
  %v1530 = vpack.c.bf16 %v1499, %v1498
  %v1531 = vpack.c.bf16 %v1501, %v1500
  %v1532 = vpack.c.bf16 %v1503, %v1502
  %v1533 = vpack.c.bf16 %v1505, %v1504
  %v1534 = vpack.c.bf16 %v1507, %v1506
  %v1535 = vpack.c.bf16 %v1509, %v1508
  %v1536 = vpack.c.bf16 %v1511, %v1510
  %v1537 = vpack.c.bf16 %v1513, %v1512
  %v1538 = vld [vmem:[%s4] sm:$0xf]
  %v1539 = vld [vmem:[%s4 + $0x4] sm:$0xf]
  %v1540 = vld [vmem:[%s4 + $0x8] sm:$0xf]
  %v1541 = vld [vmem:[%s4 + $0xc] sm:$0xf]
  %v1542 = vld [vmem:[%s4 + $0x10] sm:$0xf]
  %v1543 = vld [vmem:[%s4 + $0x14] sm:$0xf]
  %v1544 = vld [vmem:[%s4 + $0x18] sm:$0xf]
  %v1545 = vld [vmem:[%s4 + $0x1c] sm:$0xf]
  %v1546 = vld [vmem:[%s4 + $0x20] sm:$0xf]
  %v1547 = vld [vmem:[%s4 + $0x24] sm:$0xf]
  %v1548 = vld [vmem:[%s4 + $0x28] sm:$0xf]
  %v1549 = vld [vmem:[%s4 + $0x2c] sm:$0xf]
  %v1550 = vld [vmem:[%s4 + $0x30] sm:$0xf]
  %v1551 = vld [vmem:[%s4 + $0x34] sm:$0xf]
  %v1552 = vld [vmem:[%s4 + $0x38] sm:$0xf]
  %v1553 = vld [vmem:[%s4 + $0x3c] sm:$0xf]
  %v1570 = vunpack.c.l.b16 %v1538
  %v1571 = vunpack.c.l.b16 %v1539
  %v1572 = vunpack.c.l.b16 %v1540
  %v1573 = vunpack.c.l.b16 %v1541
  %v1574 = vunpack.c.l.b16 %v1542
  %v1575 = vunpack.c.l.b16 %v1543
  %v1576 = vunpack.c.l.b16 %v1544
  %v1577 = vunpack.c.l.b16 %v1545
  %v1578 = vunpack.c.l.b16 %v1546
  %v1579 = vunpack.c.l.b16 %v1547
  %v1580 = vunpack.c.l.b16 %v1548
  %v1581 = vunpack.c.l.b16 %v1549
  %v1582 = vunpack.c.l.b16 %v1550
  %v1583 = vunpack.c.l.b16 %v1551
  %v1584 = vunpack.c.l.b16 %v1552
  %v1585 = vunpack.c.l.b16 %v1553
  %v1586 = vpack.c.b16 %v1571, %v1570
  %v1587 = vpack.c.b16 %v1573, %v1572
  %v1588 = vpack.c.b16 %v1575, %v1574
  %v1589 = vpack.c.b16 %v1577, %v1576
  %v1590 = vpack.c.b16 %v1579, %v1578
  %v1591 = vpack.c.b16 %v1581, %v1580
  %v1592 = vpack.c.b16 %v1583, %v1582
  %v1593 = vpack.c.b16 %v1585, %v1584
  %1602 = vmatprep.subr.bf16.mxu0 0
  %1603 = vmatpush1.bf16.msra.mxu0 %v1593
  %1604 = vmatprep.subr.bf16.mxu0 0
  %1605 = vmatpush1.bf16.msra.mxu0 %v1592
  %1606 = vmatprep.subr.bf16.mxu0 0
  %1607 = vmatpush1.bf16.msra.mxu0 %v1591
  %1608 = vmatprep.subr.bf16.mxu0 0
  %1609 = vmatpush1.bf16.msra.mxu0 %v1590
  %1610 = vmatprep.subr.bf16.mxu0 0
  %1611 = vmatpush1.bf16.msra.mxu0 %v1589
  %1612 = vmatprep.subr.bf16.mxu0 0
  %1613 = vmatpush1.bf16.msra.mxu0 %v1588
  %1614 = vmatprep.subr.bf16.mxu0 0
  %1615 = vmatpush1.bf16.msra.mxu0 %v1587
  %1616 = vmatprep.subr.bf16.mxu0 0
  %1617 = vmatpush1.bf16.msra.mxu0 %v1586
  %1618 = vmatprep.subr.bf16.mxu0 0
  %1619 = vmatpush2.bf16.msra.mxu0 0
  %1620 = vmatprep.subr.bf16.mxu0 0
  %1621 = vmatpush2.bf16.msra.mxu0 0
  %1622 = vmatprep.subr.bf16.mxu0 0
  %1623 = vmatpush2.bf16.msra.mxu0 0
  %1624 = vmatprep.subr.bf16.mxu0 0
  %1625 = vmatpush2.bf16.msra.mxu0 0
  %1626 = vmatprep.subr.bf16.mxu0 0
  %1627 = vmatpush2.bf16.msra.mxu0 0
  %1628 = vmatprep.subr.bf16.mxu0 0
  %1629 = vmatpush2.bf16.msra.mxu0 0
  %1630 = vmatprep.subr.bf16.mxu0 0
  %1631 = vmatpush2.bf16.msra.mxu0 0
  %1632 = vmatprep.subr.bf16.mxu0 0
  %1633 = vmatpush2.bf16.msra.mxu0 0
  %1634 = vmatprep.mubr.bf16.mxu0 0
  %1635 = vmatmul.mubr.bf16.gmra.mxu0 %v1514
  %v1636 = vpop.f32.mrf.mxu0
  %v1637 = vadd.f32 0.0, %v1636
  %v1638 = vpop.f32.mrf.mxu0
  %v1639 = vpop.f32.mrf.mxu0
  %v1640 = vadd.f32 0.0, %v1639
  %v1641 = vpop.f32.mrf.mxu0
  %1642 = vmatprep.mubr.bf16.mxu0 0
  %1643 = vmatmul.mubr.bf16.gmra.mxu0 %v1515
  %v1644 = vpop.f32.mrf.mxu0
  %v1645 = vadd.f32 0.0, %v1644
  %v1646 = vpop.f32.mrf.mxu0
  %v1647 = vpop.f32.mrf.mxu0
  %v1648 = vadd.f32 0.0, %v1647
  %v1649 = vpop.f32.mrf.mxu0
  %1650 = vmatprep.mubr.bf16.mxu0 0
  %1651 = vmatmul.mubr.bf16.gmra.mxu0 %v1516
  %v1652 = vpop.f32.mrf.mxu0
  %v1653 = vadd.f32 0.0, %v1652
  %v1654 = vpop.f32.mrf.mxu0
  %v1655 = vpop.f32.mrf.mxu0
  %v1656 = vadd.f32 0.0, %v1655
  %v1657 = vpop.f32.mrf.mxu0
  %1658 = vmatprep.mubr.bf16.mxu0 0
  %1659 = vmatmul.mubr.bf16.gmra.mxu0 %v1517
  %v1660 = vpop.f32.mrf.mxu0
  %v1661 = vadd.f32 0.0, %v1660
  %v1662 = vpop.f32.mrf.mxu0
  %v1663 = vpop.f32.mrf.mxu0
  %v1664 = vadd.f32 0.0, %v1663
  %v1665 = vpop.f32.mrf.mxu0
  %1666 = vmatprep.mubr.bf16.mxu0 0
  %1667 = vmatmul.mubr.bf16.gmra.mxu0 %v1518
  %v1668 = vpop.f32.mrf.mxu0
  %v1669 = vadd.f32 0.0, %v1668
  %v1670 = vpop.f32.mrf.mxu0
  %v1671 = vpop.f32.mrf.mxu0
  %v1672 = vadd.f32 0.0, %v1671
  %v1673 = vpop.f32.mrf.mxu0
  %1674 = vmatprep.mubr.bf16.mxu0 0
  %1675 = vmatmul.mubr.bf16.gmra.mxu0 %v1519
  %v1676 = vpop.f32.mrf.mxu0
  %v1677 = vadd.f32 0.0, %v1676
  %v1678 = vpop.f32.mrf.mxu0
  %v1679 = vpop.f32.mrf.mxu0
  %v1680 = vadd.f32 0.0, %v1679
  %v1681 = vpop.f32.mrf.mxu0
  %1682 = vmatprep.mubr.bf16.mxu0 0
  %1683 = vmatmul.mubr.bf16.gmra.mxu0 %v1520
  %v1684 = vpop.f32.mrf.mxu0
  %v1685 = vadd.f32 0.0, %v1684
  %v1686 = vpop.f32.mrf.mxu0
  %v1687 = vpop.f32.mrf.mxu0
  %v1688 = vadd.f32 0.0, %v1687
  %v1689 = vpop.f32.mrf.mxu0
  %1690 = vmatprep.mubr.bf16.mxu0 0
  %1691 = vmatmul.mubr.bf16.gmra.mxu0 %v1521
  %v1692 = vpop.f32.mrf.mxu0
  %v1693 = vadd.f32 0.0, %v1692
  %v1694 = vpop.f32.mrf.mxu0
  %v1695 = vpop.f32.mrf.mxu0
  %v1696 = vadd.f32 0.0, %v1695
  %v1697 = vpop.f32.mrf.mxu0
  %1698 = vmatprep.mubr.bf16.mxu0 0
  %1699 = vmatmul.mubr.bf16.gmra.mxu0 %v1522
  %v1700 = vpop.f32.mrf.mxu0
  %v1701 = vadd.f32 0.0, %v1700
  %v1702 = vpop.f32.mrf.mxu0
  %v1703 = vpop.f32.mrf.mxu0
  %v1704 = vadd.f32 0.0, %v1703
  %v1705 = vpop.f32.mrf.mxu0
  %1706 = vmatprep.mubr.bf16.mxu0 0
  %1707 = vmatmul.mubr.bf16.gmra.mxu0 %v1523
  %v1708 = vpop.f32.mrf.mxu0
  %v1709 = vadd.f32 0.0, %v1708
  %v1710 = vpop.f32.mrf.mxu0
  %v1711 = vpop.f32.mrf.mxu0
  %v1712 = vadd.f32 0.0, %v1711
  %v1713 = vpop.f32.mrf.mxu0
  %1714 = vmatprep.mubr.bf16.mxu0 0
  %1715 = vmatmul.mubr.bf16.gmra.mxu0 %v1524
  %v1716 = vpop.f32.mrf.mxu0
  %v1717 = vadd.f32 0.0, %v1716
  %v1718 = vpop.f32.mrf.mxu0
  %v1719 = vpop.f32.mrf.mxu0
  %v1720 = vadd.f32 0.0, %v1719
  %v1721 = vpop.f32.mrf.mxu0
  %1722 = vmatprep.mubr.bf16.mxu0 0
  %1723 = vmatmul.mubr.bf16.gmra.mxu0 %v1525
  %v1724 = vpop.f32.mrf.mxu0
  %v1725 = vadd.f32 0.0, %v1724
  %v1726 = vpop.f32.mrf.mxu0
  %v1727 = vpop.f32.mrf.mxu0
  %v1728 = vadd.f32 0.0, %v1727
  %v1729 = vpop.f32.mrf.mxu0
  %1730 = vmatprep.mubr.bf16.mxu0 0
  %1731 = vmatmul.mubr.bf16.gmra.mxu0 %v1526
  %v1732 = vpop.f32.mrf.mxu0
  %v1733 = vadd.f32 0.0, %v1732
  %v1734 = vpop.f32.mrf.mxu0
  %v1735 = vpop.f32.mrf.mxu0
  %v1736 = vadd.f32 0.0, %v1735
  %v1737 = vpop.f32.mrf.mxu0
  %1738 = vmatprep.mubr.bf16.mxu0 0
  %1739 = vmatmul.mubr.bf16.gmra.mxu0 %v1527
  %v1740 = vpop.f32.mrf.mxu0
  %v1741 = vadd.f32 0.0, %v1740
  %v1742 = vpop.f32.mrf.mxu0
  %v1743 = vpop.f32.mrf.mxu0
  %v1744 = vadd.f32 0.0, %v1743
  %v1745 = vpop.f32.mrf.mxu0
  %1746 = vmatprep.mubr.bf16.mxu0 0
  %1747 = vmatmul.mubr.bf16.gmra.mxu0 %v1528
  %v1748 = vpop.f32.mrf.mxu0
  %v1749 = vadd.f32 0.0, %v1748
  %v1750 = vpop.f32.mrf.mxu0
  %v1751 = vpop.f32.mrf.mxu0
  %v1752 = vadd.f32 0.0, %v1751
  %v1753 = vpop.f32.mrf.mxu0
  %1754 = vmatprep.mubr.bf16.mxu0 0
  %1755 = vmatmul.mubr.bf16.gmra.mxu0 %v1529
  %v1756 = vpop.f32.mrf.mxu0
  %v1757 = vadd.f32 0.0, %v1756
  %v1758 = vpop.f32.mrf.mxu0
  %v1759 = vpop.f32.mrf.mxu0
  %v1760 = vadd.f32 0.0, %v1759
  %v1761 = vpop.f32.mrf.mxu0
  %1762 = vmatprep.mubr.bf16.mxu0 0
  %1763 = vmatmul.mubr.bf16.gmra.mxu0 %v1530
  %v1764 = vpop.f32.mrf.mxu0
  %v1765 = vadd.f32 0.0, %v1764
  %v1766 = vpop.f32.mrf.mxu0
  %v1767 = vpop.f32.mrf.mxu0
  %v1768 = vadd.f32 0.0, %v1767
  %v1769 = vpop.f32.mrf.mxu0
  %1770 = vmatprep.mubr.bf16.mxu0 0
  %1771 = vmatmul.mubr.bf16.gmra.mxu0 %v1531
  %v1772 = vpop.f32.mrf.mxu0
  %v1773 = vadd.f32 0.0, %v1772
  %v1774 = vpop.f32.mrf.mxu0
  %v1775 = vpop.f32.mrf.mxu0
  %v1776 = vadd.f32 0.0, %v1775
  %v1777 = vpop.f32.mrf.mxu0
  %1778 = vmatprep.mubr.bf16.mxu0 0
  %1779 = vmatmul.mubr.bf16.gmra.mxu0 %v1532
  %v1780 = vpop.f32.mrf.mxu0
  %v1781 = vadd.f32 0.0, %v1780
  %v1782 = vpop.f32.mrf.mxu0
  %v1783 = vpop.f32.mrf.mxu0
  %v1784 = vadd.f32 0.0, %v1783
  %v1785 = vpop.f32.mrf.mxu0
  %1786 = vmatprep.mubr.bf16.mxu0 0
  %1787 = vmatmul.mubr.bf16.gmra.mxu0 %v1533
  %v1788 = vpop.f32.mrf.mxu0
  %v1789 = vadd.f32 0.0, %v1788
  %v1790 = vpop.f32.mrf.mxu0
  %v1791 = vpop.f32.mrf.mxu0
  %v1792 = vadd.f32 0.0, %v1791
  %v1793 = vpop.f32.mrf.mxu0
  %1794 = vmatprep.mubr.bf16.mxu0 0
  %1795 = vmatmul.mubr.bf16.gmra.mxu0 %v1534
  %v1796 = vpop.f32.mrf.mxu0
  %v1797 = vadd.f32 0.0, %v1796
  %v1798 = vpop.f32.mrf.mxu0
  %v1799 = vpop.f32.mrf.mxu0
  %v1800 = vadd.f32 0.0, %v1799
  %v1801 = vpop.f32.mrf.mxu0
  %1802 = vmatprep.mubr.bf16.mxu0 0
  %1803 = vmatmul.mubr.bf16.gmra.mxu0 %v1535
  %v1804 = vpop.f32.mrf.mxu0
  %v1805 = vadd.f32 0.0, %v1804
  %v1806 = vpop.f32.mrf.mxu0
  %v1807 = vpop.f32.mrf.mxu0
  %v1808 = vadd.f32 0.0, %v1807
  %v1809 = vpop.f32.mrf.mxu0
  %1810 = vmatprep.mubr.bf16.mxu0 0
  %1811 = vmatmul.mubr.bf16.gmra.mxu0 %v1536
  %v1812 = vpop.f32.mrf.mxu0
  %v1813 = vadd.f32 0.0, %v1812
  %v1814 = vpop.f32.mrf.mxu0
  %v1815 = vpop.f32.mrf.mxu0
  %v1816 = vadd.f32 0.0, %v1815
  %v1817 = vpop.f32.mrf.mxu0
  %1818 = vmatprep.mubr.bf16.mxu0 0
  %1819 = vmatmul.mubr.bf16.gmra.mxu0 %v1537
  %v1820 = vpop.f32.mrf.mxu0
  %v1821 = vadd.f32 0.0, %v1820
  %v1822 = vpop.f32.mrf.mxu0
  %v1823 = vpop.f32.mrf.mxu0
  %v1824 = vadd.f32 0.0, %v1823
  %v1825 = vpop.f32.mrf.mxu0
  %1826 = vdwg.mxu0
  %v1827 = vpack.c.bf16 %v1640, %v1637
  %v1828 = vpack.c.bf16 %v1648, %v1645
  %v1829 = vpack.c.bf16 %v1656, %v1653
  %v1830 = vpack.c.bf16 %v1664, %v1661
  %v1831 = vpack.c.bf16 %v1672, %v1669
  %v1832 = vpack.c.bf16 %v1680, %v1677
  %v1833 = vpack.c.bf16 %v1688, %v1685
  %v1834 = vpack.c.bf16 %v1696, %v1693
  %v1835 = vpack.c.bf16 %v1704, %v1701
  %v1836 = vpack.c.bf16 %v1712, %v1709
  %v1837 = vpack.c.bf16 %v1720, %v1717
  %v1838 = vpack.c.bf16 %v1728, %v1725
  %v1839 = vpack.c.bf16 %v1736, %v1733
  %v1840 = vpack.c.bf16 %v1744, %v1741
  %v1841 = vpack.c.bf16 %v1752, %v1749
  %v1842 = vpack.c.bf16 %v1760, %v1757
  %v1843 = vpack.c.bf16 %v1768, %v1765
  %v1844 = vpack.c.bf16 %v1776, %v1773
  %v1845 = vpack.c.bf16 %v1784, %v1781
  %v1846 = vpack.c.bf16 %v1792, %v1789
  %v1847 = vpack.c.bf16 %v1800, %v1797
  %v1848 = vpack.c.bf16 %v1808, %v1805
  %v1849 = vpack.c.bf16 %v1816, %v1813
  %v1850 = vpack.c.bf16 %v1824, %v1821
  %v1851 = vld [vmem:[%s5] sm:$0x1]
  %v1853 = vlaneseq
  %v1854 = vshrl.u32 %v1853, 7
  %v1855 = vsub.s32 0, %v1854
  %v1856 = vrot.slane %v1851, %v1855
  %1858 = vmatprep.subr.bf16.mxu0 0
  %1859 = vmatpush1.bf16.msra.mxu0 %v1834
  %1860 = vmatprep.subr.bf16.mxu0 0
  %1861 = vmatpush1.bf16.msra.mxu0 %v1833
  %1862 = vmatprep.subr.bf16.mxu0 0
  %1863 = vmatpush1.bf16.msra.mxu0 %v1832
  %1864 = vmatprep.subr.bf16.mxu0 0
  %1865 = vmatpush1.bf16.msra.mxu0 %v1831
  %1866 = vmatprep.subr.bf16.mxu0 0
  %1867 = vmatpush1.bf16.msra.mxu0 %v1830
  %1868 = vmatprep.subr.bf16.mxu0 0
  %1869 = vmatpush1.bf16.msra.mxu0 %v1829
  %1870 = vmatprep.subr.bf16.mxu0 0
  %1871 = vmatpush1.bf16.msra.mxu0 %v1828
  %1872 = vmatprep.subr.bf16.mxu0 0
  %1873 = vmatpush1.bf16.msra.mxu0 %v1827
  %1874 = vmatprep.subr.bf16.mxu0 0
  %1875 = vmatpush2.bf16.msra.mxu0 %v1842
  %1876 = vmatprep.subr.bf16.mxu0 0
  %1877 = vmatpush2.bf16.msra.mxu0 %v1841
  %1878 = vmatprep.subr.bf16.mxu0 0
  %1879 = vmatpush2.bf16.msra.mxu0 %v1840
  %1880 = vmatprep.subr.bf16.mxu0 0
  %1881 = vmatpush2.bf16.msra.mxu0 %v1839
  %1882 = vmatprep.subr.bf16.mxu0 0
  %1883 = vmatpush2.bf16.msra.mxu0 %v1838
  %1884 = vmatprep.subr.bf16.mxu0 0
  %1885 = vmatpush2.bf16.msra.mxu0 %v1837
  %1886 = vmatprep.subr.bf16.mxu0 0
  %1887 = vmatpush2.bf16.msra.mxu0 %v1836
  %1888 = vmatprep.subr.bf16.mxu0 0
  %1889 = vmatpush2.bf16.msra.mxu0 %v1835
  %1890 = vmatprep.mubr.bf16.mxu0 %v873
  %1891 = vmatmul.mubr.bf16.gmra.mxu0 %v872
  %v1892 = vpop.f32.mrf.mxu0
  %v1893 = vadd.f32 %v1856, %v1892
  %v1894 = vpop.f32.mrf.mxu0
  %v1895 = vpop.f32.mrf.mxu0
  %v1896 = vadd.f32 %v1856, %v1895
  %v1897 = vpop.f32.mrf.mxu0
  %1898 = vmatprep.mubr.bf16.mxu0 %v876
  %1899 = vmatmul.mubr.bf16.gmra.mxu0 %v875
  %v1900 = vpop.f32.mrf.mxu0
  %v1901 = vadd.f32 %v1856, %v1900
  %v1902 = vpop.f32.mrf.mxu0
  %v1903 = vpop.f32.mrf.mxu0
  %v1904 = vadd.f32 %v1856, %v1903
  %v1905 = vpop.f32.mrf.mxu0
  %1906 = vmatprep.mubr.bf16.mxu0 %v879
  %1907 = vmatmul.mubr.bf16.gmra.mxu0 %v878
  %v1908 = vpop.f32.mrf.mxu0
  %v1909 = vadd.f32 %v1856, %v1908
  %v1910 = vpop.f32.mrf.mxu0
  %v1911 = vpop.f32.mrf.mxu0
  %v1912 = vadd.f32 %v1856, %v1911
  %v1913 = vpop.f32.mrf.mxu0
  %1914 = vmatprep.mubr.bf16.mxu0 %v882
  %1915 = vmatmul.mubr.bf16.gmra.mxu0 %v881
  %v1916 = vpop.f32.mrf.mxu0
  %v1917 = vadd.f32 %v1856, %v1916
  %v1918 = vpop.f32.mrf.mxu0
  %v1919 = vpop.f32.mrf.mxu0
  %v1920 = vadd.f32 %v1856, %v1919
  %v1921 = vpop.f32.mrf.mxu0
  %1922 = vmatprep.mubr.bf16.mxu0 %v885
  %1923 = vmatmul.mubr.bf16.gmra.mxu0 %v884
  %v1924 = vpop.f32.mrf.mxu0
  %v1925 = vadd.f32 %v1856, %v1924
  %v1926 = vpop.f32.mrf.mxu0
  %v1927 = vpop.f32.mrf.mxu0
  %v1928 = vadd.f32 %v1856, %v1927
  %v1929 = vpop.f32.mrf.mxu0
  %1930 = vmatprep.mubr.bf16.mxu0 %v888
  %1931 = vmatmul.mubr.bf16.gmra.mxu0 %v887
  %v1932 = vpop.f32.mrf.mxu0
  %v1933 = vadd.f32 %v1856, %v1932
  %v1934 = vpop.f32.mrf.mxu0
  %v1935 = vpop.f32.mrf.mxu0
  %v1936 = vadd.f32 %v1856, %v1935
  %v1937 = vpop.f32.mrf.mxu0
  %1938 = vmatprep.mubr.bf16.mxu0 %v891
  %1939 = vmatmul.mubr.bf16.gmra.mxu0 %v890
  %v1940 = vpop.f32.mrf.mxu0
  %v1941 = vadd.f32 %v1856, %v1940
  %v1942 = vpop.f32.mrf.mxu0
  %v1943 = vpop.f32.mrf.mxu0
  %v1944 = vadd.f32 %v1856, %v1943
  %v1945 = vpop.f32.mrf.mxu0
  %1946 = vmatprep.mubr.bf16.mxu0 %v894
  %1947 = vmatmul.mubr.bf16.gmra.mxu0 %v893
  %v1948 = vpop.f32.mrf.mxu0
  %v1949 = vadd.f32 %v1856, %v1948
  %v1950 = vpop.f32.mrf.mxu0
  %v1951 = vpop.f32.mrf.mxu0
  %v1952 = vadd.f32 %v1856, %v1951
  %v1953 = vpop.f32.mrf.mxu0
  %1954 = vmatprep.mubr.bf16.mxu0 %v897
  %1955 = vmatmul.mubr.bf16.gmra.mxu0 %v896
  %v1956 = vpop.f32.mrf.mxu0
  %v1957 = vadd.f32 %v1856, %v1956
  %v1958 = vpop.f32.mrf.mxu0
  %v1959 = vpop.f32.mrf.mxu0
  %v1960 = vadd.f32 %v1856, %v1959
  %v1961 = vpop.f32.mrf.mxu0
  %1962 = vmatprep.mubr.bf16.mxu0 %v900
  %1963 = vmatmul.mubr.bf16.gmra.mxu0 %v899
  %v1964 = vpop.f32.mrf.mxu0
  %v1965 = vadd.f32 %v1856, %v1964
  %v1966 = vpop.f32.mrf.mxu0
  %v1967 = vpop.f32.mrf.mxu0
  %v1968 = vadd.f32 %v1856, %v1967
  %v1969 = vpop.f32.mrf.mxu0
  %1970 = vmatprep.mubr.bf16.mxu0 %v903
  %1971 = vmatmul.mubr.bf16.gmra.mxu0 %v902
  %v1972 = vpop.f32.mrf.mxu0
  %v1973 = vadd.f32 %v1856, %v1972
  %v1974 = vpop.f32.mrf.mxu0
  %v1975 = vpop.f32.mrf.mxu0
  %v1976 = vadd.f32 %v1856, %v1975
  %v1977 = vpop.f32.mrf.mxu0
  %1978 = vmatprep.mubr.bf16.mxu0 %v906
  %1979 = vmatmul.mubr.bf16.gmra.mxu0 %v905
  %v1980 = vpop.f32.mrf.mxu0
  %v1981 = vadd.f32 %v1856, %v1980
  %v1982 = vpop.f32.mrf.mxu0
  %v1983 = vpop.f32.mrf.mxu0
  %v1984 = vadd.f32 %v1856, %v1983
  %v1985 = vpop.f32.mrf.mxu0
  %1986 = vmatprep.mubr.bf16.mxu0 %v909
  %1987 = vmatmul.mubr.bf16.gmra.mxu0 %v908
  %v1988 = vpop.f32.mrf.mxu0
  %v1989 = vadd.f32 %v1856, %v1988
  %v1990 = vpop.f32.mrf.mxu0
  %v1991 = vpop.f32.mrf.mxu0
  %v1992 = vadd.f32 %v1856, %v1991
  %v1993 = vpop.f32.mrf.mxu0
  %1994 = vmatprep.mubr.bf16.mxu0 %v912
  %1995 = vmatmul.mubr.bf16.gmra.mxu0 %v911
  %v1996 = vpop.f32.mrf.mxu0
  %v1997 = vadd.f32 %v1856, %v1996
  %v1998 = vpop.f32.mrf.mxu0
  %v1999 = vpop.f32.mrf.mxu0
  %v2000 = vadd.f32 %v1856, %v1999
  %v2001 = vpop.f32.mrf.mxu0
  %2002 = vmatprep.mubr.bf16.mxu0 %v915
  %2003 = vmatmul.mubr.bf16.gmra.mxu0 %v914
  %v2004 = vpop.f32.mrf.mxu0
  %v2005 = vadd.f32 %v1856, %v2004
  %v2006 = vpop.f32.mrf.mxu0
  %v2007 = vpop.f32.mrf.mxu0
  %v2008 = vadd.f32 %v1856, %v2007
  %v2009 = vpop.f32.mrf.mxu0
  %2010 = vmatprep.mubr.bf16.mxu0 %v918
  %2011 = vmatmul.mubr.bf16.gmra.mxu0 %v917
  %v2012 = vpop.f32.mrf.mxu0
  %v2013 = vadd.f32 %v1856, %v2012
  %v2014 = vpop.f32.mrf.mxu0
  %v2015 = vpop.f32.mrf.mxu0
  %v2016 = vadd.f32 %v1856, %v2015
  %v2017 = vpop.f32.mrf.mxu0
  %2018 = vmatprep.mubr.bf16.mxu0 %v921
  %2019 = vmatmul.mubr.bf16.gmra.mxu0 %v920
  %v2020 = vpop.f32.mrf.mxu0
  %v2021 = vadd.f32 %v1856, %v2020
  %v2022 = vpop.f32.mrf.mxu0
  %v2023 = vpop.f32.mrf.mxu0
  %v2024 = vadd.f32 %v1856, %v2023
  %v2025 = vpop.f32.mrf.mxu0
  %2026 = vmatprep.mubr.bf16.mxu0 %v924
  %2027 = vmatmul.mubr.bf16.gmra.mxu0 %v923
  %v2028 = vpop.f32.mrf.mxu0
  %v2029 = vadd.f32 %v1856, %v2028
  %v2030 = vpop.f32.mrf.mxu0
  %v2031 = vpop.f32.mrf.mxu0
  %v2032 = vadd.f32 %v1856, %v2031
  %v2033 = vpop.f32.mrf.mxu0
  %2034 = vmatprep.mubr.bf16.mxu0 %v927
  %2035 = vmatmul.mubr.bf16.gmra.mxu0 %v926
  %v2036 = vpop.f32.mrf.mxu0
  %v2037 = vadd.f32 %v1856, %v2036
  %v2038 = vpop.f32.mrf.mxu0
  %v2039 = vpop.f32.mrf.mxu0
  %v2040 = vadd.f32 %v1856, %v2039
  %v2041 = vpop.f32.mrf.mxu0
  %2042 = vmatprep.mubr.bf16.mxu0 %v930
  %2043 = vmatmul.mubr.bf16.gmra.mxu0 %v929
  %v2044 = vpop.f32.mrf.mxu0
  %v2045 = vadd.f32 %v1856, %v2044
  %v2046 = vpop.f32.mrf.mxu0
  %v2047 = vpop.f32.mrf.mxu0
  %v2048 = vadd.f32 %v1856, %v2047
  %v2049 = vpop.f32.mrf.mxu0
  %2050 = vmatprep.mubr.bf16.mxu0 %v933
  %2051 = vmatmul.mubr.bf16.gmra.mxu0 %v932
  %v2052 = vpop.f32.mrf.mxu0
  %v2053 = vadd.f32 %v1856, %v2052
  %v2054 = vpop.f32.mrf.mxu0
  %v2055 = vpop.f32.mrf.mxu0
  %v2056 = vadd.f32 %v1856, %v2055
  %v2057 = vpop.f32.mrf.mxu0
  %2058 = vmatprep.mubr.bf16.mxu0 %v936
  %2059 = vmatmul.mubr.bf16.gmra.mxu0 %v935
  %v2060 = vpop.f32.mrf.mxu0
  %v2061 = vadd.f32 %v1856, %v2060
  %v2062 = vpop.f32.mrf.mxu0
  %v2063 = vpop.f32.mrf.mxu0
  %v2064 = vadd.f32 %v1856, %v2063
  %v2065 = vpop.f32.mrf.mxu0
  %2066 = vmatprep.mubr.bf16.mxu0 %v939
  %2067 = vmatmul.mubr.bf16.gmra.mxu0 %v938
  %v2068 = vpop.f32.mrf.mxu0
  %v2069 = vadd.f32 %v1856, %v2068
  %v2070 = vpop.f32.mrf.mxu0
  %v2071 = vpop.f32.mrf.mxu0
  %v2072 = vadd.f32 %v1856, %v2071
  %v2073 = vpop.f32.mrf.mxu0
  %2074 = vmatprep.mubr.bf16.mxu0 %v942
  %2075 = vmatmul.mubr.bf16.gmra.mxu0 %v941
  %v2076 = vpop.f32.mrf.mxu0
  %v2077 = vadd.f32 %v1856, %v2076
  %v2078 = vpop.f32.mrf.mxu0
  %v2079 = vpop.f32.mrf.mxu0
  %v2080 = vadd.f32 %v1856, %v2079
  %v2081 = vpop.f32.mrf.mxu0
  %2082 = vdwg.mxu0
  %2083 = vmatprep.subr.bf16.mxu0 0
  %2084 = vmatpush1.bf16.msra.mxu0 %v1850
  %2085 = vmatprep.subr.bf16.mxu0 0
  %2086 = vmatpush1.bf16.msra.mxu0 %v1849
  %2087 = vmatprep.subr.bf16.mxu0 0
  %2088 = vmatpush1.bf16.msra.mxu0 %v1848
  %2089 = vmatprep.subr.bf16.mxu0 0
  %2090 = vmatpush1.bf16.msra.mxu0 %v1847
  %2091 = vmatprep.subr.bf16.mxu0 0
  %2092 = vmatpush1.bf16.msra.mxu0 %v1846
  %2093 = vmatprep.subr.bf16.mxu0 0
  %2094 = vmatpush1.bf16.msra.mxu0 %v1845
  %2095 = vmatprep.subr.bf16.mxu0 0
  %2096 = vmatpush1.bf16.msra.mxu0 %v1844
  %2097 = vmatprep.subr.bf16.mxu0 0
  %2098 = vmatpush1.bf16.msra.mxu0 %v1843
  %2099 = vmatprep.subr.bf16.mxu0 0
  %2100 = vmatpush2.bf16.msra.mxu0 0
  %2101 = vmatprep.subr.bf16.mxu0 0
  %2102 = vmatpush2.bf16.msra.mxu0 0
  %2103 = vmatprep.subr.bf16.mxu0 0
  %2104 = vmatpush2.bf16.msra.mxu0 0
  %2105 = vmatprep.subr.bf16.mxu0 0
  %2106 = vmatpush2.bf16.msra.mxu0 0
  %2107 = vmatprep.subr.bf16.mxu0 0
  %2108 = vmatpush2.bf16.msra.mxu0 0
  %2109 = vmatprep.subr.bf16.mxu0 0
  %2110 = vmatpush2.bf16.msra.mxu0 0
  %2111 = vmatprep.subr.bf16.mxu0 0
  %2112 = vmatpush2.bf16.msra.mxu0 0
  %2113 = vmatprep.subr.bf16.mxu0 0
  %2114 = vmatpush2.bf16.msra.mxu0 0
  %2115 = vmatprep.mubr.bf16.mxu0 0
  %2116 = vmatmul.mubr.bf16.gmra.mxu0 %v874
  %v2117 = vpop.f32.mrf.mxu0
  %v2118 = vadd.f32 %v1893, %v2117
  %v2119 = vpop.f32.mrf.mxu0
  %v2120 = vpop.f32.mrf.mxu0
  %v2121 = vadd.f32 %v1896, %v2120
  %v2122 = vpop.f32.mrf.mxu0
  %2123 = vmatprep.mubr.bf16.mxu0 0
  %2124 = vmatmul.mubr.bf16.gmra.mxu0 %v877
  %v2125 = vpop.f32.mrf.mxu0
  %v2126 = vadd.f32 %v1901, %v2125
  %v2127 = vpop.f32.mrf.mxu0
  %v2128 = vpop.f32.mrf.mxu0
  %v2129 = vadd.f32 %v1904, %v2128
  %v2130 = vpop.f32.mrf.mxu0
  %2131 = vmatprep.mubr.bf16.mxu0 0
  %2132 = vmatmul.mubr.bf16.gmra.mxu0 %v880
  %v2133 = vpop.f32.mrf.mxu0
  %v2134 = vadd.f32 %v1909, %v2133
  %v2135 = vpop.f32.mrf.mxu0
  %v2136 = vpop.f32.mrf.mxu0
  %v2137 = vadd.f32 %v1912, %v2136
  %v2138 = vpop.f32.mrf.mxu0
  %2139 = vmatprep.mubr.bf16.mxu0 0
  %2140 = vmatmul.mubr.bf16.gmra.mxu0 %v883
  %v2141 = vpop.f32.mrf.mxu0
  %v2142 = vadd.f32 %v1917, %v2141
  %v2143 = vpop.f32.mrf.mxu0
  %v2144 = vpop.f32.mrf.mxu0
  %v2145 = vadd.f32 %v1920, %v2144
  %v2146 = vpop.f32.mrf.mxu0
  %2147 = vmatprep.mubr.bf16.mxu0 0
  %2148 = vmatmul.mubr.bf16.gmra.mxu0 %v886
  %v2149 = vpop.f32.mrf.mxu0
  %v2150 = vadd.f32 %v1925, %v2149
  %v2151 = vpop.f32.mrf.mxu0
  %v2152 = vpop.f32.mrf.mxu0
  %v2153 = vadd.f32 %v1928, %v2152
  %v2154 = vpop.f32.mrf.mxu0
  %2155 = vmatprep.mubr.bf16.mxu0 0
  %2156 = vmatmul.mubr.bf16.gmra.mxu0 %v889
  %v2157 = vpop.f32.mrf.mxu0
  %v2158 = vadd.f32 %v1933, %v2157
  %v2159 = vpop.f32.mrf.mxu0
  %v2160 = vpop.f32.mrf.mxu0
  %v2161 = vadd.f32 %v1936, %v2160
  %v2162 = vpop.f32.mrf.mxu0
  %2163 = vmatprep.mubr.bf16.mxu0 0
  %2164 = vmatmul.mubr.bf16.gmra.mxu0 %v892
  %v2165 = vpop.f32.mrf.mxu0
  %v2166 = vadd.f32 %v1941, %v2165
  %v2167 = vpop.f32.mrf.mxu0
  %v2168 = vpop.f32.mrf.mxu0
  %v2169 = vadd.f32 %v1944, %v2168
  %v2170 = vpop.f32.mrf.mxu0
  %2171 = vmatprep.mubr.bf16.mxu0 0
  %2172 = vmatmul.mubr.bf16.gmra.mxu0 %v895
  %v2173 = vpop.f32.mrf.mxu0
  %v2174 = vadd.f32 %v1949, %v2173
  %v2175 = vpop.f32.mrf.mxu0
  %v2176 = vpop.f32.mrf.mxu0
  %v2177 = vadd.f32 %v1952, %v2176
  %v2178 = vpop.f32.mrf.mxu0
  %2179 = vmatprep.mubr.bf16.mxu0 0
  %2180 = vmatmul.mubr.bf16.gmra.mxu0 %v898
  %v2181 = vpop.f32.mrf.mxu0
  %v2182 = vadd.f32 %v1957, %v2181
  %v2183 = vpop.f32.mrf.mxu0
  %v2184 = vpop.f32.mrf.mxu0
  %v2185 = vadd.f32 %v1960, %v2184
  %v2186 = vpop.f32.mrf.mxu0
  %2187 = vmatprep.mubr.bf16.mxu0 0
  %2188 = vmatmul.mubr.bf16.gmra.mxu0 %v901
  %v2189 = vpop.f32.mrf.mxu0
  %v2190 = vadd.f32 %v1965, %v2189
  %v2191 = vpop.f32.mrf.mxu0
  %v2192 = vpop.f32.mrf.mxu0
  %v2193 = vadd.f32 %v1968, %v2192
  %v2194 = vpop.f32.mrf.mxu0
  %2195 = vmatprep.mubr.bf16.mxu0 0
  %2196 = vmatmul.mubr.bf16.gmra.mxu0 %v904
  %v2197 = vpop.f32.mrf.mxu0
  %v2198 = vadd.f32 %v1973, %v2197
  %v2199 = vpop.f32.mrf.mxu0
  %v2200 = vpop.f32.mrf.mxu0
  %v2201 = vadd.f32 %v1976, %v2200
  %v2202 = vpop.f32.mrf.mxu0
  %2203 = vmatprep.mubr.bf16.mxu0 0
  %2204 = vmatmul.mubr.bf16.gmra.mxu0 %v907
  %v2205 = vpop.f32.mrf.mxu0
  %v2206 = vadd.f32 %v1981, %v2205
  %v2207 = vpop.f32.mrf.mxu0
  %v2208 = vpop.f32.mrf.mxu0
  %v2209 = vadd.f32 %v1984, %v2208
  %v2210 = vpop.f32.mrf.mxu0
  %2211 = vmatprep.mubr.bf16.mxu0 0
  %2212 = vmatmul.mubr.bf16.gmra.mxu0 %v910
  %v2213 = vpop.f32.mrf.mxu0
  %v2214 = vadd.f32 %v1989, %v2213
  %v2215 = vpop.f32.mrf.mxu0
  %v2216 = vpop.f32.mrf.mxu0
  %v2217 = vadd.f32 %v1992, %v2216
  %v2218 = vpop.f32.mrf.mxu0
  %2219 = vmatprep.mubr.bf16.mxu0 0
  %2220 = vmatmul.mubr.bf16.gmra.mxu0 %v913
  %v2221 = vpop.f32.mrf.mxu0
  %v2222 = vadd.f32 %v1997, %v2221
  %v2223 = vpop.f32.mrf.mxu0
  %v2224 = vpop.f32.mrf.mxu0
  %v2225 = vadd.f32 %v2000, %v2224
  %v2226 = vpop.f32.mrf.mxu0
  %2227 = vmatprep.mubr.bf16.mxu0 0
  %2228 = vmatmul.mubr.bf16.gmra.mxu0 %v916
  %v2229 = vpop.f32.mrf.mxu0
  %v2230 = vadd.f32 %v2005, %v2229
  %v2231 = vpop.f32.mrf.mxu0
  %v2232 = vpop.f32.mrf.mxu0
  %v2233 = vadd.f32 %v2008, %v2232
  %v2234 = vpop.f32.mrf.mxu0
  %2235 = vmatprep.mubr.bf16.mxu0 0
  %2236 = vmatmul.mubr.bf16.gmra.mxu0 %v919
  %v2237 = vpop.f32.mrf.mxu0
  %v2238 = vadd.f32 %v2013, %v2237
  %v2239 = vpop.f32.mrf.mxu0
  %v2240 = vpop.f32.mrf.mxu0
  %v2241 = vadd.f32 %v2016, %v2240
  %v2242 = vpop.f32.mrf.mxu0
  %2243 = vmatprep.mubr.bf16.mxu0 0
  %2244 = vmatmul.mubr.bf16.gmra.mxu0 %v922
  %v2245 = vpop.f32.mrf.mxu0
  %v2246 = vadd.f32 %v2021, %v2245
  %v2247 = vpop.f32.mrf.mxu0
  %v2248 = vpop.f32.mrf.mxu0
  %v2249 = vadd.f32 %v2024, %v2248
  %v2250 = vpop.f32.mrf.mxu0
  %2251 = vmatprep.mubr.bf16.mxu0 0
  %2252 = vmatmul.mubr.bf16.gmra.mxu0 %v925
  %v2253 = vpop.f32.mrf.mxu0
  %v2254 = vadd.f32 %v2029, %v2253
  %v2255 = vpop.f32.mrf.mxu0
  %v2256 = vpop.f32.mrf.mxu0
  %v2257 = vadd.f32 %v2032, %v2256
  %v2258 = vpop.f32.mrf.mxu0
  %2259 = vmatprep.mubr.bf16.mxu0 0
  %2260 = vmatmul.mubr.bf16.gmra.mxu0 %v928
  %v2261 = vpop.f32.mrf.mxu0
  %v2262 = vadd.f32 %v2037, %v2261
  %v2263 = vpop.f32.mrf.mxu0
  %v2264 = vpop.f32.mrf.mxu0
  %v2265 = vadd.f32 %v2040, %v2264
  %v2266 = vpop.f32.mrf.mxu0
  %2267 = vmatprep.mubr.bf16.mxu0 0
  %2268 = vmatmul.mubr.bf16.gmra.mxu0 %v931
  %v2269 = vpop.f32.mrf.mxu0
  %v2270 = vadd.f32 %v2045, %v2269
  %v2271 = vpop.f32.mrf.mxu0
  %v2272 = vpop.f32.mrf.mxu0
  %v2273 = vadd.f32 %v2048, %v2272
  %v2274 = vpop.f32.mrf.mxu0
  %2275 = vmatprep.mubr.bf16.mxu0 0
  %2276 = vmatmul.mubr.bf16.gmra.mxu0 %v934
  %v2277 = vpop.f32.mrf.mxu0
  %v2278 = vadd.f32 %v2053, %v2277
  %v2279 = vpop.f32.mrf.mxu0
  %v2280 = vpop.f32.mrf.mxu0
  %v2281 = vadd.f32 %v2056, %v2280
  %v2282 = vpop.f32.mrf.mxu0
  %2283 = vmatprep.mubr.bf16.mxu0 0
  %2284 = vmatmul.mubr.bf16.gmra.mxu0 %v937
  %v2285 = vpop.f32.mrf.mxu0
  %v2286 = vadd.f32 %v2061, %v2285
  %v2287 = vpop.f32.mrf.mxu0
  %v2288 = vpop.f32.mrf.mxu0
  %v2289 = vadd.f32 %v2064, %v2288
  %v2290 = vpop.f32.mrf.mxu0
  %2291 = vmatprep.mubr.bf16.mxu0 0
  %2292 = vmatmul.mubr.bf16.gmra.mxu0 %v940
  %v2293 = vpop.f32.mrf.mxu0
  %v2294 = vadd.f32 %v2069, %v2293
  %v2295 = vpop.f32.mrf.mxu0
  %v2296 = vpop.f32.mrf.mxu0
  %v2297 = vadd.f32 %v2072, %v2296
  %v2298 = vpop.f32.mrf.mxu0
  %2299 = vmatprep.mubr.bf16.mxu0 0
  %2300 = vmatmul.mubr.bf16.gmra.mxu0 %v943
  %v2301 = vpop.f32.mrf.mxu0
  %v2302 = vadd.f32 %v2077, %v2301
  %v2303 = vpop.f32.mrf.mxu0
  %v2304 = vpop.f32.mrf.mxu0
  %v2305 = vadd.f32 %v2080, %v2304
  %v2306 = vpop.f32.mrf.mxu0
  %2307 = vdwg.mxu0
  %2308 = vst [vmem:[%s6] sm:$0xff] %v2118
  %2309 = vst [vmem:[%s6 + $0x8] sm:$0xff] %v2121
  %2310 = vst [vmem:[%s6 + $0x10] sm:$0xff] %v2126
  %2311 = vst [vmem:[%s6 + $0x18] sm:$0xff] %v2129
  %2312 = vst [vmem:[%s6 + $0x20] sm:$0xff] %v2134
  %2313 = vst [vmem:[%s6 + $0x28] sm:$0xff] %v2137
  %2314 = vst [vmem:[%s6 + $0x30] sm:$0xff] %v2142
  %2315 = vst [vmem:[%s6 + $0x38] sm:$0xff] %v2145
  %2316 = vst [vmem:[%s6 + $0x40] sm:$0xff] %v2150
  %2317 = vst [vmem:[%s6 + $0x48] sm:$0xff] %v2153
  %2318 = vst [vmem:[%s6 + $0x50] sm:$0xff] %v2158
  %2319 = vst [vmem:[%s6 + $0x58] sm:$0xff] %v2161
  %2320 = vst [vmem:[%s6 + $0x60] sm:$0xff] %v2166
  %2321 = vst [vmem:[%s6 + $0x68] sm:$0xff] %v2169
  %2322 = vst [vmem:[%s6 + $0x70] sm:$0xff] %v2174
  %2323 = vst [vmem:[%s6 + $0x78] sm:$0xff] %v2177
  %2324 = vst [vmem:[%s6 + $0x80] sm:$0xff] %v2182
  %2325 = vst [vmem:[%s6 + $0x88] sm:$0xff] %v2185
  %2326 = vst [vmem:[%s6 + $0x90] sm:$0xff] %v2190
  %2327 = vst [vmem:[%s6 + $0x98] sm:$0xff] %v2193
  %2328 = vst [vmem:[%s6 + $0xa0] sm:$0xff] %v2198
  %2329 = vst [vmem:[%s6 + $0xa8] sm:$0xff] %v2201
  %2330 = vst [vmem:[%s6 + $0xb0] sm:$0xff] %v2206
  %2331 = vst [vmem:[%s6 + $0xb8] sm:$0xff] %v2209
  %2332 = vst [vmem:[%s6 + $0xc0] sm:$0xff] %v2214
  %2333 = vst [vmem:[%s6 + $0xc8] sm:$0xff] %v2217
  %2334 = vst [vmem:[%s6 + $0xd0] sm:$0xff] %v2222
  %2335 = vst [vmem:[%s6 + $0xd8] sm:$0xff] %v2225
  %2336 = vst [vmem:[%s6 + $0xe0] sm:$0xff] %v2230
  %2337 = vst [vmem:[%s6 + $0xe8] sm:$0xff] %v2233
  %2338 = vst [vmem:[%s6 + $0xf0] sm:$0xff] %v2238
  %2339 = vst [vmem:[%s6 + $0xf8] sm:$0xff] %v2241
  %2340 = vst [vmem:[%s6 + $0x100] sm:$0xff] %v2246
  %2341 = vst [vmem:[%s6 + $0x108] sm:$0xff] %v2249
  %2342 = vst [vmem:[%s6 + $0x110] sm:$0xff] %v2254
  %2343 = vst [vmem:[%s6 + $0x118] sm:$0xff] %v2257
  %2344 = vst [vmem:[%s6 + $0x120] sm:$0xff] %v2262
  %2345 = vst [vmem:[%s6 + $0x128] sm:$0xff] %v2265
  %2346 = vst [vmem:[%s6 + $0x130] sm:$0xff] %v2270
  %2347 = vst [vmem:[%s6 + $0x138] sm:$0xff] %v2273
  %2348 = vst [vmem:[%s6 + $0x140] sm:$0xff] %v2278
  %2349 = vst [vmem:[%s6 + $0x148] sm:$0xff] %v2281
  %2350 = vst [vmem:[%s6 + $0x150] sm:$0xff] %v2286
  %2351 = vst [vmem:[%s6 + $0x158] sm:$0xff] %v2289
  %2352 = vst [vmem:[%s6 + $0x160] sm:$0xff] %v2294
  %2353 = vst [vmem:[%s6 + $0x168] sm:$0xff] %v2297
  %2354 = vst [vmem:[%s6 + $0x170] sm:$0xff] %v2302
  %2355 = vst [vmem:[%s6 + $0x178] sm:$0xff] %v2305
  // Predicated region
  $region26: #{_forward_fused.1} parent=0 // pred_check
    _
  $region27: #{_forward_fused.1} parent=0 // pred_check_branch
    %2357 = sbr.rel (0) target = $region29
  $region28: #{_forward_fused.1} parent=0 // pred_region
    _
  $region29: #{_forward_fused.1} parent=0 // pred_fallthru
    _
  // Predicated region
  $region30: #{_forward_fused.1} parent=0 // pred_check
    _
  $region31: #{_forward_fused.1} parent=0 // pred_check_branch
    %2359 = sbr.rel (0) target = $region33
  $region32: #{_forward_fused.1} parent=0 // pred_region
    _
  $region33: #{_forward_fused.1} parent=0 // pred_fallthru
    _

</llo_original>
